<compile_context>
chip_gen: v7x
topology: tpu7x:2x2x1
jax: 0.10.0
libtpu: 0.0.40
codegen_flags: <defaults>
</compile_context>

<pallas_src>
import functools
import math

import jax
import jax.numpy as jnp
from jax.experimental import pallas as pl
from jax.experimental.pallas import tpu as pltpu

LN_EPS = 1e-12
_LANE_TILES = (1024, 512, 384, 256, 128)           # last-dim tiles (lane axis)
_ROW_TILES = (512, 256, 128, 64, 32, 16)           # bf16 outputs -> min sublane tile 16
_CE_ROW_TILES = (1024,) + _ROW_TILES               # decoder+CE x row-panel tiles


def _vmem_limit_bytes():
    # generation-aware: leave headroom for Mosaic internal scratch.
    try:
        cap = pltpu.get_tpu_info().vmem_capacity_bytes
    except Exception:
        cap = 128 * 1024 * 1024
    return 40 * 1024 * 1024 if cap <= 64 * 1024 * 1024 else 64 * 1024 * 1024


_VMEM_LIMIT = _vmem_limit_bytes()


def _round_up(x, m):
    return ((x + m - 1) // m) * m


def _pick(dim, candidates):
    for t in candidates:
        if dim % t == 0:
            return t
    return dim  # full-dim block fallback (valid for any size)


def _gelu(x):
    # TODO(synk): reference GELU is erf-based (x*0.5*(1+erf(x/sqrt(2)))); the tanh
    # approximation is used since erf lowering is not guaranteed in Mosaic.
    c = math.sqrt(2.0 / math.pi)
    return 0.5 * x * (1.0 + jnp.tanh(c * (x + 0.044715 * x * x * x)))


# --------------------- dense: matmul + bias + activation ---------------------
def _dense_kernel(x_ref, w_ref, b_ref, o_ref, acc_ref, *, activation, n_k):
    k = pl.program_id(2)

    @pl.when(k == 0)
    def _():
        acc_ref[...] = jnp.zeros_like(acc_ref)

    acc_ref[...] += jnp.dot(x_ref[...].astype(jnp.bfloat16),
                            w_ref[...].astype(jnp.bfloat16),
                            preferred_element_type=jnp.float32)

    @pl.when(k == n_k - 1)
    def _():
        y = acc_ref[...] + b_ref[...].astype(jnp.float32)
        if activation == "gelu":
            y = _gelu(y)
        elif activation == "tanh":
            y = jnp.tanh(y)
        o_ref[...] = y.astype(o_ref.dtype)


def dense(x, w, b, activation=None):
    """y = x @ w + b.  w stored [in_features, out_features] bf16; output bf16."""
    M, K = x.shape
    K2, N = w.shape
    assert K == K2
    tm = _pick(M, _ROW_TILES)
    tn = _pick(N, _LANE_TILES)
    tk = _pick(K, _LANE_TILES)
    grid = (M // tm, N // tn, K // tk)
    kernel = functools.partial(_dense_kernel, activation=activation, n_k=grid[2])
    return pl.pallas_call(
        kernel,
        out_shape=jax.ShapeDtypeStruct((M, N), jnp.bfloat16),
        grid_spec=pltpu.PrefetchScalarGridSpec(
            num_scalar_prefetch=0,
            grid=grid,
            in_specs=[
                pl.BlockSpec((tm, tk), lambda i, j, k: (i, k)),
                pl.BlockSpec((tk, tn), lambda i, j, k: (k, j)),
                pl.BlockSpec((1, tn), lambda i, j, k: (0, j)),
            ],
            out_specs=pl.BlockSpec((tm, tn), lambda i, j, k: (i, j)),
            scratch_shapes=[pltpu.VMEM((tm, tn), jnp.float32)],
        ),
        compiler_params=pltpu.CompilerParams(
            dimension_semantics=("parallel", "parallel", "arbitrary"),
            vmem_limit_bytes=_VMEM_LIMIT),
    )(x, w, b.reshape(1, N))


# ----------- dense fused with bias + (gelu) + residual + LayerNorm -----------
def _ln_epilogue(y, g_ref, bt_ref, o_ref, eps):
    mu = jnp.mean(y, axis=-1, keepdims=True)
    var = jnp.mean(jnp.square(y - mu), axis=-1, keepdims=True)
    y = (y - mu) * jax.lax.rsqrt(var + eps)
    y = y * g_ref[...].astype(jnp.float32) + bt_ref[...].astype(jnp.float32)
    o_ref[...] = y.astype(o_ref.dtype)


def _dense_ln_kernel(x_ref, w_ref, b_ref, g_ref, bt_ref, o_ref, acc_ref, *,
                     n_k, activation, eps):
    k = pl.program_id(1)

    @pl.when(k == 0)
    def _():
        acc_ref[...] = jnp.zeros_like(acc_ref)

    acc_ref[...] += jnp.dot(x_ref[...].astype(jnp.bfloat16),
                            w_ref[...].astype(jnp.bfloat16),
                            preferred_element_type=jnp.float32)

    @pl.when(k == n_k - 1)
    def _():
        y = acc_ref[...] + b_ref[...].astype(jnp.float32)
        if activation == "gelu":
            y = _gelu(y)
        _ln_epilogue(y, g_ref, bt_ref, o_ref, eps)


def _dense_res_ln_kernel(x_ref, w_ref, b_ref, r_ref, g_ref, bt_ref, o_ref, acc_ref, *,
                         n_k, activation, eps):
    k = pl.program_id(1)

    @pl.when(k == 0)
    def _():
        acc_ref[...] = jnp.zeros_like(acc_ref)

    acc_ref[...] += jnp.dot(x_ref[...].astype(jnp.bfloat16),
                            w_ref[...].astype(jnp.bfloat16),
                            preferred_element_type=jnp.float32)

    @pl.when(k == n_k - 1)
    def _():
        y = acc_ref[...] + b_ref[...].astype(jnp.float32)
        if activation == "gelu":
            y = _gelu(y)
        y = y + r_ref[...].astype(jnp.float32)
        _ln_epilogue(y, g_ref, bt_ref, o_ref, eps)


def dense_ln(x, w, b, gamma, beta, residual=None, activation=None, eps=LN_EPS):
    """LayerNorm(act(x @ w + b) [+ residual]) with the LN fused into the dense
    epilogue (tn == full output width), so the pre-LN activation never hits HBM."""
    M, K = x.shape
    K2, N = w.shape
    assert K == K2
    tm = _pick(M, _ROW_TILES)
    tk = _pick(K, _LANE_TILES)
    grid = (M // tm, K // tk)
    x_spec = pl.BlockSpec((tm, tk), lambda i, k: (i, k))
    w_spec = pl.BlockSpec((tk, N), lambda i, k: (k, 0))
    vec_spec = pl.BlockSpec((1, N), lambda i, k: (0, 0))
    out_spec = pl.BlockSpec((tm, N), lambda i, k: (i, 0))
    if residual is None:
        kernel = functools.partial(_dense_ln_kernel, n_k=grid[1],
                                   activation=activation, eps=eps)
        in_specs = [x_spec, w_spec, vec_spec, vec_spec, vec_spec]
        args = (x, w, b.reshape(1, N), gamma.reshape(1, N), beta.reshape(1, N))
    else:
        kernel = functools.partial(_dense_res_ln_kernel, n_k=grid[1],
                                   activation=activation, eps=eps)
        res_spec = pl.BlockSpec((tm, N), lambda i, k: (i, 0))
        in_specs = [x_spec, w_spec, vec_spec, res_spec, vec_spec, vec_spec]
        args = (x, w, b.reshape(1, N), residual,
                gamma.reshape(1, N), beta.reshape(1, N))
    return pl.pallas_call(
        kernel,
        out_shape=jax.ShapeDtypeStruct((M, N), jnp.bfloat16),
        grid_spec=pltpu.PrefetchScalarGridSpec(
            num_scalar_prefetch=0,
            grid=grid,
            in_specs=in_specs,
            out_specs=out_spec,
            scratch_shapes=[pltpu.VMEM((tm, N), jnp.float32)],
        ),
        compiler_params=pltpu.CompilerParams(
            dimension_semantics=("parallel", "arbitrary"),
            vmem_limit_bytes=_VMEM_LIMIT),
    )(*args)


# -------------------------- fused self-attention core ------------------------
def _attn_kernel(q_ref, k_ref, v_ref, m_ref, o_ref, *, hb, dh, scale):
    mask = m_ref[...].astype(jnp.float32)          # (1, S) additive key mask
    q_all = q_ref[...]                             # (S, hb*dh) bf16
    k_all = k_ref[...]
    v_all = v_ref[...]
    outs = []
    for h in range(hb):                            # static unroll over heads in the group
        sl = slice(h * dh, (h + 1) * dh)
        qh = (q_all[:, sl] * scale).astype(jnp.bfloat16)   # fold 1/sqrt(DH) into q
        kh = k_all[:, sl].astype(jnp.bfloat16)
        vh = v_all[:, sl].astype(jnp.bfloat16)
        s = jax.lax.dot_general(qh, kh, (((1,), (1,)), ((), ())),
                                preferred_element_type=jnp.float32)     # (S, S)
        s = s + mask
        s = s - jnp.max(s, axis=-1, keepdims=True)
        p = jnp.exp(s)
        p = p * pl.reciprocal(jnp.sum(p, axis=-1, keepdims=True), approx=True)
        outs.append(jnp.dot(p.astype(jnp.bfloat16), vh,
                            preferred_element_type=jnp.float32))
    o = outs[0] if hb == 1 else jnp.concatenate(outs, axis=-1)          # (S, hb*dh)
    o_ref[...] = o.astype(o_ref.dtype)             # single lane-dense store (>=128 lanes)


def attention(qkv3, mask_add, num_heads, head_dim):
    """qkv3: (B, S, 3H) bf16 slab laid out [Q(NH,DH) | K(NH,DH) | V(NH,DH)].
    Reads per-head-group slices straight from the slab (no JAX transposes) and writes
    the context in (B, S, H) layout so the head merge is a free reshape."""
    B, S, H3 = qkv3.shape
    H = H3 // 3
    hb = num_heads                                 # heads per grid step
    for c in (8, 6, 4, 3, 2, 1):
        if num_heads % c == 0 and (c * head_dim) % 128 == 0:
            hb = c
            break
    nhb = num_heads // hb
    blk = hb * head_dim
    kernel = functools.partial(_attn_kernel, hb=hb, dh=head_dim,
                               scale=1.0 / math.sqrt(head_dim))
    return pl.pallas_call(
        kernel,
        out_shape=jax.ShapeDtypeStruct((B, S, H), jnp.bfloat16),
        grid_spec=pltpu.PrefetchScalarGridSpec(
            num_scalar_prefetch=0,
            grid=(B, nhb),
            in_specs=[
                pl.BlockSpec((None, S, blk), lambda b, g: (b, 0, g)),            # Q
                pl.BlockSpec((None, S, blk), lambda b, g: (b, 0, nhb + g)),      # K
                pl.BlockSpec((None, S, blk), lambda b, g: (b, 0, 2 * nhb + g)),  # V
                pl.BlockSpec((1, S), lambda b, g: (b, 0)),                       # mask
            ],
            out_specs=pl.BlockSpec((None, S, blk), lambda b, g: (b, 0, g)),
        ),
        compiler_params=pltpu.CompilerParams(
            dimension_semantics=("parallel", "parallel"),
            vmem_limit_bytes=_VMEM_LIMIT),
    )(qkv3, qkv3, qkv3, mask_add)


# -------- fused classifier matmul + CrossEntropyLoss(ignore=-1, sum) ---------
def _dense_ce_kernel(x_ref, w_ref, b_ref, lab_ref, loss_ref,
                     m_ref, s_ref, p_ref, *, n_j, tv, vocab):
    j = pl.program_id(1)

    @pl.when(j == 0)
    def _():
        m_ref[...] = jnp.full_like(m_ref, -1e30)
        s_ref[...] = jnp.zeros_like(s_ref)
        p_ref[...] = jnp.zeros_like(p_ref)

    # logits tile: full-K contraction, x[tm,K] against w[tv,K] (no transpose materialized)
    logits = jax.lax.dot_general(
        x_ref[...].astype(jnp.bfloat16), w_ref[...].astype(jnp.bfloat16),
        (((1,), (1,)), ((), ())), preferred_element_type=jnp.float32)
    logits = logits + b_ref[...].astype(jnp.float32)                    # (tm, tv)

    col = jax.lax.broadcasted_iota(jnp.int32, logits.shape, 1) + j * tv
    labels = lab_ref[...]                                               # (tm, 1)
    valid_col = col < vocab

    # online log-sum-exp across vocab tiles (padded classes contribute nothing)
    m_tile = jnp.max(jnp.where(valid_col, logits, jnp.float32(-1e30)),
                     axis=-1, keepdims=True)
    m_new = jnp.maximum(m_ref[...], m_tile)
    alpha = jnp.exp(m_ref[...] - m_new)
    e = jnp.where(valid_col, jnp.exp(logits - m_new), 0.0)
    s_ref[...] = s_ref[...] * alpha + jnp.sum(e, axis=-1, keepdims=True)
    m_ref[...] = m_new
    # picked logit of the target class (never in the padded range)
    p_ref[...] += jnp.sum(jnp.where(col == labels, logits, 0.0),
                          axis=-1, keepdims=True)

    @pl.when(j == n_j - 1)
    def _():
        lse = jnp.log(s_ref[...]) + m_ref[...]
        valid = (labels >= 0).astype(jnp.float32)      # ignore_index == -1
        loss_ref[...] = jnp.sum(valid * (lse - p_ref[...]), keepdims=True)


def dense_ce_sum(x, w_nt, b, labels, vocab):
    """Per-row-block partials of CrossEntropy(ignore_index=-1, reduction='sum') of
    logits = x @ w_nt.T + b, never writing the logits to HBM.  The x row-panel (tm, K)
    stays resident while vocab tiles stream over j.  Returns (M//tm, 1) partials."""
    M, K = x.shape
    N, K2 = w_nt.shape
    assert K == K2 and vocab <= N
    tm = _pick(M, _CE_ROW_TILES)
    tv = _pick(N, _LANE_TILES)
    grid = (M // tm, N // tv)
    kernel = functools.partial(_dense_ce_kernel, n_j=grid[1], tv=tv, vocab=vocab)
    return pl.pallas_call(
        kernel,
        out_shape=jax.ShapeDtypeStruct((grid[0], 1), jnp.float32),
        grid_spec=pltpu.PrefetchScalarGridSpec(
            num_scalar_prefetch=0,
            grid=grid,
            in_specs=[
                pl.BlockSpec((tm, K), lambda i, j: (i, 0)),    # x row-panel, resident over j
                pl.BlockSpec((tv, K), lambda i, j: (j, 0)),    # decoder weight tile
                pl.BlockSpec((1, tv), lambda i, j: (0, j)),    # decoder bias tile
                pl.BlockSpec((tm, 1), lambda i, j: (i, 0)),    # labels
            ],
            out_specs=pl.BlockSpec((1, 1), lambda i, j: (i, 0)),
            scratch_shapes=[
                pltpu.VMEM((tm, 1), jnp.float32),   # running max
                pltpu.VMEM((tm, 1), jnp.float32),   # running sum-exp
                pltpu.VMEM((tm, 1), jnp.float32),   # picked logit
            ],
        ),
        compiler_params=pltpu.CompilerParams(
            dimension_semantics=("parallel", "arbitrary"),
            vmem_limit_bytes=_VMEM_LIMIT),
    )(x, w_nt, b.reshape(1, N), labels.reshape(M, 1).astype(jnp.int32))


# ------------------------------- parameters ----------------------------------
def init_params(key, *, num_layers, hidden, intermediate, vocab):
    def nxt():
        nonlocal key
        key, sub = jax.random.split(key)
        return sub

    def w(shape):  # matmul weights stored bf16 (MXU-native); biases/LN params f32
        return (0.02 * jax.random.normal(nxt(), shape)).astype(jnp.bfloat16)

    zeros = lambda n: jnp.zeros((n,), jnp.float32)
    ones = lambda n: jnp.ones((n,), jnp.float32)

    params = {"layers": []}
    for _ in range(num_layers):
        params["layers"].append({
            "qkv_w": w((hidden, 3 * hidden)), "qkv_b": zeros(3 * hidden),
            "ao_w": w((hidden, hidden)), "ao_b": zeros(hidden),
            "aln_g": ones(hidden), "aln_b": zeros(hidden),
            "i_w": w((hidden, intermediate)), "i_b": zeros(intermediate),
            "o_w": w((intermediate, hidden)), "o_b": zeros(hidden),
            "oln_g": ones(hidden), "oln_b": zeros(hidden),
        })
    params["pool_w"] = w((hidden, hidden)); params["pool_b"] = zeros(hidden)
    params["tr_w"] = w((hidden, hidden)); params["tr_b"] = zeros(hidden)
    params["trln_g"] = ones(hidden); params["trln_b"] = zeros(hidden)

    # Tied MLM decoder weight kept in [vocab, hidden] layout, zero-padded once to a
    # lane-aligned class count so the fused decoder+CE kernel gets dense tiles.
    vp = _round_up(vocab, 512) if vocab >= 512 else _round_up(vocab, 128)
    we = 0.02 * jax.random.normal(nxt(), (vocab, hidden))
    we = jnp.pad(we, ((0, vp - vocab), (0, 0)))
    params["word_emb"] = we.astype(jnp.bfloat16)
    params["dec_b"] = zeros(vp)
    params["nsp_w"] = w((2, hidden)); params["nsp_b"] = zeros(2)
    return params


# ---------------------------- full forward pass -------------------------------
def bert_exclude_embedding_forward(params, input_ids, embedding_output,
                                   attention_mask, masked_lm_labels,
                                   labels, next_sentence_labels, *,
                                   num_heads, vocab_size):
    del masked_lm_labels  # only used when sequence_output_is_dense=True (False here)
    B, S, H = embedding_output.shape
    DH = H // num_heads

    if attention_mask is None:
        attention_mask = jnp.ones_like(input_ids)
    # extended mask: (1 - mask).to(fp16) * -10000, broadcast over heads/queries
    ext = (1.0 - attention_mask.astype(jnp.float16)) * jnp.float16(-10000.0)
    mask_add = ext.astype(jnp.float32)                    # (B, S)

    x = embedding_output.astype(jnp.bfloat16).reshape(B * S, H)   # bf16 activations
    for lp in params["layers"]:
        qkv = dense(x, lp["qkv_w"], lp["qkv_b"])                  # (B*S, 3H) bf16
        ctx = attention(qkv.reshape(B, S, 3 * H), mask_add, num_heads, DH)  # (B, S, H)
        ctx = ctx.reshape(B * S, H)                               # free reshape
        # TODO(synk): dropout layers treated as identity (eval semantics).
        x_attn = dense_ln(ctx, lp["ao_w"], lp["ao_b"],
                          lp["aln_g"], lp["aln_b"], residual=x)
        inter = dense(x_attn, lp["i_w"], lp["i_b"], activation="gelu")
        x = dense_ln(inter, lp["o_w"], lp["o_b"],
                     lp["oln_g"], lp["oln_b"], residual=x_attn)

    sequence_output = x                                   # (B*S, H) bf16

    # BertPooler + NSP head in plain JAX (M=B, N=2 tiles are sub-minimal for the MXU)
    first_tok = sequence_output.reshape(B, S, H)[:, 0, :].astype(jnp.float32)
    pooled = jnp.tanh(first_tok @ params["pool_w"].astype(jnp.float32)
                      + params["pool_b"])
    nsp_logits = pooled @ params["nsp_w"].astype(jnp.float32).T + params["nsp_b"]
    nsp_lbl = next_sentence_labels.reshape(-1)
    nsp_lse = jax.scipy.special.logsumexp(nsp_logits, axis=-1)
    nsp_pick = jnp.take_along_axis(
        nsp_logits, jnp.maximum(nsp_lbl, 0)[:, None], axis=-1)[:, 0]
    nsp_valid = (nsp_lbl >= 0).astype(jnp.float32)        # ignore_index == -1
    nsp_loss = jnp.sum(nsp_valid * (nsp_lse - nsp_pick))

    # MLM head: transform (dense + gelu + LN fused), tied decoder fused with CE-sum.
    # TODO(synk): gathering only labeled rows (labels != -1) before the transform/decoder
    # would shrink the decoder GEMM ~6-7x; skipped to keep shapes static here.
    t = dense_ln(sequence_output, params["tr_w"], params["tr_b"],
                 params["trln_g"], params["trln_b"],
                 residual=None, activation="gelu")
    mlm_partials = dense_ce_sum(t, params["word_emb"], params["dec_b"],
                                labels.reshape(-1), vocab=vocab_size)
    mlm_loss = jnp.sum(mlm_partials)

    return mlm_loss + nsp_loss


if __name__ == "__main__":
    B, S, H, NH, I, V, L = 2, 128, 128, 2, 512, 512, 2

    key = jax.random.PRNGKey(0)
    kp, kemb, kids, klab, kkeep, knsp = jax.random.split(key, 6)
    params = init_params(kp, num_layers=L, hidden=H, intermediate=I, vocab=V)

    input_ids = jax.random.randint(kids, (B, S), 0, V, dtype=jnp.int32)
    embedding_output = jax.random.normal(kemb, (B, S, H), dtype=jnp.float32)
    attention_mask = jnp.ones((B, S), jnp.int32).at[1, S - 16:].set(0)

    raw_labels = jax.random.randint(klab, (B, S), 0, V, dtype=jnp.int32)
    keep = jax.random.uniform(kkeep, (B, S)) < 0.15
    labels = jnp.where(keep, raw_labels, -1)                 # -1 = ignore_index
    masked_lm_labels = labels
    next_sentence_labels = jax.random.randint(knsp, (B,), 0, 2, dtype=jnp.int32)

    loss = bert_exclude_embedding_forward(
        params, input_ids, embedding_output, attention_mask,
        masked_lm_labels, labels, next_sentence_labels,
        num_heads=NH, vocab_size=V)
    jax.block_until_ready(loss)
    assert loss.shape == () and jnp.isfinite(loss)
    print("KERNEL_OK")
</pallas_src>

<mosaic_0001>
module attributes {stable_mosaic.version = 11 : i64} {
  func.func @_dense_kernel(%arg0: i32, %arg1: i32, %arg2: i32, %arg3: memref<256x128xbf16, #tpu.memory_space<vmem>>, %arg4: memref<128x384xbf16, #tpu.memory_space<vmem>>, %arg5: memref<1x384xf32, #tpu.memory_space<vmem>>, %arg6: memref<256x384xbf16, #tpu.memory_space<vmem>>, %arg7: memref<256x384xf32, #tpu.memory_space<vmem>>) attributes {dimension_semantics = [#tpu.dimension_semantics<parallel>, #tpu.dimension_semantics<parallel>, #tpu.dimension_semantics<arbitrary>], iteration_bounds = array<i64: 1, 1, 1>, scalar_prefetch = 0 : i64, scratch_operands = 1 : i64, tpu.core_type = #tpu.core_type<tc>, window_params = [{transform_indices = @transform_0, window_bounds = array<i64: 256, 128>}, {transform_indices = @transform_1, window_bounds = array<i64: 128, 384>}, {transform_indices = @transform_2, window_bounds = array<i64: 1, 384>}, {transform_indices = @transform_3, window_bounds = array<i64: 256, 384>}]} {
    %c0_i32 = arith.constant 0 : i32
    %0 = arith.cmpi eq, %arg2, %c0_i32 : i32
    %1 = arith.extui %0 : i1 to i32
    %c0_i32_0 = arith.constant 0 : i32
    %2 = arith.cmpi ne, %1, %c0_i32_0 : i32
    scf.if %2 {
      %cst_10 = arith.constant 0.000000e+00 : f32
      %12 = vector.broadcast %cst_10 : f32 to vector<256x384xf32>
      %c0_11 = arith.constant 0 : index
      %c0_12 = arith.constant 0 : index
      %13 = vector.load %arg7[%c0_11, %c0_12] : memref<256x384xf32, #tpu.memory_space<vmem>>, vector<256x384xf32>
      tpu.vector_store %arg7[%c0_11, %c0_12], %12 {strides = array<i32>} : memref<256x384xf32, #tpu.memory_space<vmem>>, vector<256x384xf32>,
    } else {
    }
    %c0 = arith.constant 0 : index
    %c0_1 = arith.constant 0 : index
    %3 = vector.load %arg7[%c0, %c0_1] : memref<256x384xf32, #tpu.memory_space<vmem>>, vector<256x384xf32>
    %c0_2 = arith.constant 0 : index
    %c0_3 = arith.constant 0 : index
    %4 = vector.load %arg3[%c0_2, %c0_3] : memref<256x128xbf16, #tpu.memory_space<vmem>>, vector<256x128xbf16>
    %c0_4 = arith.constant 0 : index
    %c0_5 = arith.constant 0 : index
    %5 = vector.load %arg4[%c0_4, %c0_5] : memref<128x384xbf16, #tpu.memory_space<vmem>>, vector<128x384xbf16>
    %cst = arith.constant dense<0.000000e+00> : vector<256x384xf32>
    %6 = tpu.matmul %4, %5, %cst {dimension_numbers = #tpu.dot_dimension_numbers<[1], [0], [0], [1], [0, 0, 1, 1], [], []>} : vector<256x128xbf16>, vector<128x384xbf16>, vector<256x384xf32> -> vector<256x384xf32>
    %7 = arith.addf %3, %6 : vector<256x384xf32>
    %c0_6 = arith.constant 0 : index
    %c0_7 = arith.constant 0 : index
    %8 = vector.load %arg7[%c0_6, %c0_7] : memref<256x384xf32, #tpu.memory_space<vmem>>, vector<256x384xf32>
    tpu.vector_store %arg7[%c0_6, %c0_7], %7 {strides = array<i32>} : memref<256x384xf32, #tpu.memory_space<vmem>>, vector<256x384xf32>,
    %c0_i32_8 = arith.constant 0 : i32
    %9 = arith.cmpi eq, %arg2, %c0_i32_8 : i32
    %10 = arith.extui %9 : i1 to i32
    %c0_i32_9 = arith.constant 0 : i32
    %11 = arith.cmpi ne, %10, %c0_i32_9 : i32
    scf.if %11 {
      %c0_10 = arith.constant 0 : index
      %c0_11 = arith.constant 0 : index
      %12 = vector.load %arg7[%c0_10, %c0_11] : memref<256x384xf32, #tpu.memory_space<vmem>>, vector<256x384xf32>
      %c0_12 = arith.constant 0 : index
      %c0_13 = arith.constant 0 : index
      %13 = vector.load %arg5[%c0_12, %c0_13] : memref<1x384xf32, #tpu.memory_space<vmem>>, vector<1x384xf32>
      %14 = vector.broadcast %13 : vector<1x384xf32> to vector<256x384xf32>
      %15 = arith.addf %12, %14 : vector<256x384xf32>
      %16 = arith.truncf %15 : vector<256x384xf32> to vector<256x384xbf16>
      %c0_14 = arith.constant 0 : index
      %c0_15 = arith.constant 0 : index
      %17 = vector.load %arg6[%c0_14, %c0_15] : memref<256x384xbf16, #tpu.memory_space<vmem>>, vector<256x384xbf16>
      tpu.vector_store %arg6[%c0_14, %c0_15], %16 {strides = array<i32>} : memref<256x384xbf16, #tpu.memory_space<vmem>>, vector<256x384xbf16>,
    } else {
    }
    return
  }
  func.func @transform_0(%arg0: i32, %arg1: i32, %arg2: i32) -> (i32, i32) {
    %c0_i32 = arith.constant 0 : i32
    return %arg0, %arg2 : i32, i32
  }
  func.func @transform_1(%arg0: i32, %arg1: i32, %arg2: i32) -> (i32, i32) {
    %c0_i32 = arith.constant 0 : i32
    return %arg2, %arg1 : i32, i32
  }
  func.func @transform_2(%arg0: i32, %arg1: i32, %arg2: i32) -> (i32, i32) {
    %c0_i32 = arith.constant 0 : i32
    %c0_i32_0 = arith.constant 0 : i32
    return %c0_i32, %arg1 : i32, i32
  }
  func.func @transform_3(%arg0: i32, %arg1: i32, %arg2: i32) -> (i32, i32) {
    %c0_i32 = arith.constant 0 : i32
    return %arg0, %arg1 : i32, i32
  }
}

</mosaic_0001>

<llo_original>
// kernel: tpu_custom_call.1
$region0: #{tpu_custom_call.1}
  #allocation0 [shape = 'u32[]', space=smem, size = 0x4, offset = 0x4, fixed_abs, tag = 'smem constant byte address 0x4 - core index']
  #allocation1 [shape = 'u32[144,128]{1,0:T(1,128)}', space=vmem, size = 0x12000, scoped, tag = 'internal scratch']
  #allocation2 [shape = 'f32[256,384]{1,0:T(8,128)}', space=vmem, size = 0x60000, scoped, tag = 'scratch operand']
  %s0 = inlined_call_operand.hbm [shape: bf16[256,128], index: 0, kind: input, shape index: {}]
  %s1 = inlined_call_operand.hbm [shape: bf16[128,384], index: 1, kind: input, shape index: {}]
  %s2 = inlined_call_operand.hbm [shape: f32[1,384], index: 2, kind: input, shape index: {}]
  %s3 = inlined_call_operand.hbm [shape: bf16[256,384], index: 3, kind: output, shape index: {}]
  %s4 = sld [smem:[#allocation0]]
  $region42: #{tpu_custom_call.1} parent=0
    _
  %s6 = ssub.s32 1, %s4
  %s7 = scalar_select 0, %s6, %s4
  $region1: #{tpu_custom_call.1} parent=0
    #allocation3 [shape = 'u8[65536]{0}', space=vmem, size = 0x10000, scoped, tag = 'input window, operand 0, single buffered']
    #allocation4 [shape = 's32[1]{0}', space=sflag, size = 0x4, scoped, tag = 'scoped memory for tpu_custom_call.1']
    #allocation5 [shape = 's32[1]{0}', space=sflag, size = 0x4, scoped, tag = 'scoped memory for tpu_custom_call.1']
    #allocation6 [shape = 'u8[98304]{0}', space=vmem, size = 0x18000, scoped, tag = 'input window, operand 1, single buffered']
    #allocation7 [shape = 's32[1]{0}', space=sflag, size = 0x4, scoped, tag = 'scoped memory for tpu_custom_call.1']
    #allocation8 [shape = 'u8[1536]{0}', space=vmem, size = 0x800, scoped, tag = 'input window, operand 2, single buffered']
    #allocation9 [shape = 'u8[196608]{0}', space=vmem, size = 0x30000, scoped, tag = 'output window, operand 0, single buffered']
    %8 = vsyncpa [#allocation4], 0
    %9 = vsyncpa [#allocation7], 0
    %10 = vsyncpa [#allocation5], 0
    // Predicated region
    $region2: #{tpu_custom_call.1} parent=1 // pred_check
      _
    $region3: #{tpu_custom_call.1} parent=1 // pred_check_branch
      %12 = sbr.rel (0) target = $region5
    $region4: #{tpu_custom_call.1} parent=1 // pred_region
      %s14 = ssub.s32 2048, 2048
      %15 = vsyncadd [#allocation4], %s14
      %s16 = sshll.u32 [#allocation3], 4
      %s17 = int_to_ptr.vmem [resolvable:$true] %s16
      %22 = dma.hbm_to_vmem [thread:$0]  %s0, 2048, %s17, [#allocation4], 64, 64, 4
    $region5: #{tpu_custom_call.1} parent=1 // pred_fallthru
      _
    // Predicated region
    $region6: #{tpu_custom_call.1} parent=1 // pred_check
      _
    $region7: #{tpu_custom_call.1} parent=1 // pred_check_branch
      %24 = sbr.rel (0) target = $region9
    $region8: #{tpu_custom_call.1} parent=1 // pred_region
      %s26 = ssub.s32 3072, 3072
      %27 = vsyncadd [#allocation7], %s26
      %s28 = sshll.u32 [#allocation6], 4
      %s29 = int_to_ptr.vmem [resolvable:$true] %s28
      %34 = dma.hbm_to_vmem [thread:$0]  %s1, 3072, %s29, [#allocation7], 192, 192, 12
    $region9: #{tpu_custom_call.1} parent=1 // pred_fallthru
      _
    // Predicated region
    $region10: #{tpu_custom_call.1} parent=1 // pred_check
      _
    $region11: #{tpu_custom_call.1} parent=1 // pred_check_branch
      %36 = sbr.rel (0) target = $region13
    $region12: #{tpu_custom_call.1} parent=1 // pred_region
      %s38 = ssub.s32 48, 48
      %39 = vsyncadd [#allocation7], %s38
      %s41 = sshll.u32 [#allocation8], 4
      %s42 = int_to_ptr.vmem [resolvable:$true] %s41
      %44 = dma.hbm_to_vmem [thread:$0]  %s2, 48, %s42, [#allocation7]
    $region13: #{tpu_custom_call.1} parent=1 // pred_fallthru
      _
    // Predicated region
    $region14: #{tpu_custom_call.1} parent=1 // pred_check
      _
    $region15: #{tpu_custom_call.1} parent=1 // pred_check_branch
      %46 = sbr.rel (0) target = $region17
    $region16: #{tpu_custom_call.1} parent=1 // pred_region
      %47 = dma.done [#allocation4], 2048
    $region17: #{tpu_custom_call.1} parent=1 // pred_fallthru
      _
    // Predicated region
    $region18: #{tpu_custom_call.1} parent=1 // pred_check
      _
    $region19: #{tpu_custom_call.1} parent=1 // pred_check_branch
      %49 = sbr.rel (0) target = $region21
    $region20: #{tpu_custom_call.1} parent=1 // pred_region
      %50 = dma.done [#allocation7], 3072
    $region21: #{tpu_custom_call.1} parent=1 // pred_fallthru
      _
    // Predicated region
    $region22: #{tpu_custom_call.1} parent=1 // pred_check
      _
    $region23: #{tpu_custom_call.1} parent=1 // pred_check_branch
      %52 = sbr.rel (0) target = $region25
    $region24: #{tpu_custom_call.1} parent=1 // pred_region
      %53 = dma.done [#allocation7], 48
    $region25: #{tpu_custom_call.1} parent=1 // pred_fallthru
      _
    %p55 = scmp.eq.s32.totalorder 0, 0
    // Predicated region
    $region26: #{tpu_custom_call.1} parent=1 // pred_check
      %p56 = pneg %p55
    $region27: #{tpu_custom_call.1} parent=1 // pred_check_branch
      %58 = sbr.rel (%p56) target = $region29
    $region28: #{tpu_custom_call.1} parent=1 // pred_region
      %59 = vst [vmem:[#allocation2] sm:$0xff] 0.0
      %60 = vst [vmem:[#allocation2 + $0x8] sm:$0xff] 0.0
      %61 = vst [vmem:[#allocation2 + $0x10] sm:$0xff] 0.0
      %62 = vst [vmem:[#allocation2 + $0x18] sm:$0xff] 0.0
      %63 = vst [vmem:[#allocation2 + $0x20] sm:$0xff] 0.0
      %64 = vst [vmem:[#allocation2 + $0x28] sm:$0xff] 0.0
      %65 = vst [vmem:[#allocation2 + $0x30] sm:$0xff] 0.0
      %66 = vst [vmem:[#allocation2 + $0x38] sm:$0xff] 0.0
      %67 = vst [vmem:[#allocation2 + $0x40] sm:$0xff] 0.0
      %68 = vst [vmem:[#allocation2 + $0x48] sm:$0xff] 0.0
      %69 = vst [vmem:[#allocation2 + $0x50] sm:$0xff] 0.0
      %70 = vst [vmem:[#allocation2 + $0x58] sm:$0xff] 0.0
      %71 = vst [vmem:[#allocation2 + $0x60] sm:$0xff] 0.0
      %72 = vst [vmem:[#allocation2 + $0x68] sm:$0xff] 0.0
      %73 = vst [vmem:[#allocation2 + $0x70] sm:$0xff] 0.0
      %74 = vst [vmem:[#allocation2 + $0x78] sm:$0xff] 0.0
      %75 = vst [vmem:[#allocation2 + $0x80] sm:$0xff] 0.0
      %76 = vst [vmem:[#allocation2 + $0x88] sm:$0xff] 0.0
      %77 = vst [vmem:[#allocation2 + $0x90] sm:$0xff] 0.0
      %78 = vst [vmem:[#allocation2 + $0x98] sm:$0xff] 0.0
      %79 = vst [vmem:[#allocation2 + $0xa0] sm:$0xff] 0.0
      %80 = vst [vmem:[#allocation2 + $0xa8] sm:$0xff] 0.0
      %81 = vst [vmem:[#allocation2 + $0xb0] sm:$0xff] 0.0
      %82 = vst [vmem:[#allocation2 + $0xb8] sm:$0xff] 0.0
      %83 = vst [vmem:[#allocation2 + $0xc0] sm:$0xff] 0.0
      %84 = vst [vmem:[#allocation2 + $0xc8] sm:$0xff] 0.0
      %85 = vst [vmem:[#allocation2 + $0xd0] sm:$0xff] 0.0
      %86 = vst [vmem:[#allocation2 + $0xd8] sm:$0xff] 0.0
      %87 = vst [vmem:[#allocation2 + $0xe0] sm:$0xff] 0.0
      %88 = vst [vmem:[#allocation2 + $0xe8] sm:$0xff] 0.0
      %89 = vst [vmem:[#allocation2 + $0xf0] sm:$0xff] 0.0
      %90 = vst [vmem:[#allocation2 + $0xf8] sm:$0xff] 0.0
      %91 = vst [vmem:[#allocation2 + $0x100] sm:$0xff] 0.0
      %92 = vst [vmem:[#allocation2 + $0x108] sm:$0xff] 0.0
      %93 = vst [vmem:[#allocation2 + $0x110] sm:$0xff] 0.0
      %94 = vst [vmem:[#allocation2 + $0x118] sm:$0xff] 0.0
      %95 = vst [vmem:[#allocation2 + $0x120] sm:$0xff] 0.0
      %96 = vst [vmem:[#allocation2 + $0x128] sm:$0xff] 0.0
      %97 = vst [vmem:[#allocation2 + $0x130] sm:$0xff] 0.0
      %98 = vst [vmem:[#allocation2 + $0x138] sm:$0xff] 0.0
      %99 = vst [vmem:[#allocation2 + $0x140] sm:$0xff] 0.0
      %100 = vst [vmem:[#allocation2 + $0x148] sm:$0xff] 0.0
      %101 = vst [vmem:[#allocation2 + $0x150] sm:$0xff] 0.0
      %102 = vst [vmem:[#allocation2 + $0x158] sm:$0xff] 0.0
      %103 = vst [vmem:[#allocation2 + $0x160] sm:$0xff] 0.0
      %104 = vst [vmem:[#allocation2 + $0x168] sm:$0xff] 0.0
      %105 = vst [vmem:[#allocation2 + $0x170] sm:$0xff] 0.0
      %106 = vst [vmem:[#allocation2 + $0x178] sm:$0xff] 0.0
      %107 = vst [vmem:[#allocation2 + $0x180] sm:$0xff] 0.0
      %108 = vst [vmem:[#allocation2 + $0x188] sm:$0xff] 0.0
      %109 = vst [vmem:[#allocation2 + $0x190] sm:$0xff] 0.0
      %110 = vst [vmem:[#allocation2 + $0x198] sm:$0xff] 0.0
      %111 = vst [vmem:[#allocation2 + $0x1a0] sm:$0xff] 0.0
      %112 = vst [vmem:[#allocation2 + $0x1a8] sm:$0xff] 0.0
      %113 = vst [vmem:[#allocation2 + $0x1b0] sm:$0xff] 0.0
      %114 = vst [vmem:[#allocation2 + $0x1b8] sm:$0xff] 0.0
      %115 = vst [vmem:[#allocation2 + $0x1c0] sm:$0xff] 0.0
      %116 = vst [vmem:[#allocation2 + $0x1c8] sm:$0xff] 0.0
      %117 = vst [vmem:[#allocation2 + $0x1d0] sm:$0xff] 0.0
      %118 = vst [vmem:[#allocation2 + $0x1d8] sm:$0xff] 0.0
      %119 = vst [vmem:[#allocation2 + $0x1e0] sm:$0xff] 0.0
      %120 = vst [vmem:[#allocation2 + $0x1e8] sm:$0xff] 0.0
      %121 = vst [vmem:[#allocation2 + $0x1f0] sm:$0xff] 0.0
      %122 = vst [vmem:[#allocation2 + $0x1f8] sm:$0xff] 0.0
      %123 = vst [vmem:[#allocation2 + $0x200] sm:$0xff] 0.0
      %124 = vst [vmem:[#allocation2 + $0x208] sm:$0xff] 0.0
      %125 = vst [vmem:[#allocation2 + $0x210] sm:$0xff] 0.0
      %126 = vst [vmem:[#allocation2 + $0x218] sm:$0xff] 0.0
      %127 = vst [vmem:[#allocation2 + $0x220] sm:$0xff] 0.0
      %128 = vst [vmem:[#allocation2 + $0x228] sm:$0xff] 0.0
      %129 = vst [vmem:[#allocation2 + $0x230] sm:$0xff] 0.0
      %130 = vst [vmem:[#allocation2 + $0x238] sm:$0xff] 0.0
      %131 = vst [vmem:[#allocation2 + $0x240] sm:$0xff] 0.0
      %132 = vst [vmem:[#allocation2 + $0x248] sm:$0xff] 0.0
      %133 = vst [vmem:[#allocation2 + $0x250] sm:$0xff] 0.0
      %134 = vst [vmem:[#allocation2 + $0x258] sm:$0xff] 0.0
      %135 = vst [vmem:[#allocation2 + $0x260] sm:$0xff] 0.0
      %136 = vst [vmem:[#allocation2 + $0x268] sm:$0xff] 0.0
      %137 = vst [vmem:[#allocation2 + $0x270] sm:$0xff] 0.0
      %138 = vst [vmem:[#allocation2 + $0x278] sm:$0xff] 0.0
      %139 = vst [vmem:[#allocation2 + $0x280] sm:$0xff] 0.0
      %140 = vst [vmem:[#allocation2 + $0x288] sm:$0xff] 0.0
      %141 = vst [vmem:[#allocation2 + $0x290] sm:$0xff] 0.0
      %142 = vst [vmem:[#allocation2 + $0x298] sm:$0xff] 0.0
      %143 = vst [vmem:[#allocation2 + $0x2a0] sm:$0xff] 0.0
      %144 = vst [vmem:[#allocation2 + $0x2a8] sm:$0xff] 0.0
      %145 = vst [vmem:[#allocation2 + $0x2b0] sm:$0xff] 0.0
      %146 = vst [vmem:[#allocation2 + $0x2b8] sm:$0xff] 0.0
      %147 = vst [vmem:[#allocation2 + $0x2c0] sm:$0xff] 0.0
      %148 = vst [vmem:[#allocation2 + $0x2c8] sm:$0xff] 0.0
      %149 = vst [vmem:[#allocation2 + $0x2d0] sm:$0xff] 0.0
      %150 = vst [vmem:[#allocation2 + $0x2d8] sm:$0xff] 0.0
      %151 = vst [vmem:[#allocation2 + $0x2e0] sm:$0xff] 0.0
      %152 = vst [vmem:[#allocation2 + $0x2e8] sm:$0xff] 0.0
      %153 = vst [vmem:[#allocation2 + $0x2f0] sm:$0xff] 0.0
      %154 = vst [vmem:[#allocation2 + $0x2f8] sm:$0xff] 0.0
    $region29: #{tpu_custom_call.1} parent=1 // pred_fallthru
      _
    %v155 = vld [vmem:[#allocation2] sm:$0xff]
    %v156 = vld [vmem:[#allocation2 + $0x8] sm:$0xff]
    %v157 = vld [vmem:[#allocation2 + $0x10] sm:$0xff]
    %v158 = vld [vmem:[#allocation2 + $0x18] sm:$0xff]
    %v159 = vld [vmem:[#allocation2 + $0x20] sm:$0xff]
    %v160 = vld [vmem:[#allocation2 + $0x28] sm:$0xff]
    %v161 = vld [vmem:[#allocation2 + $0x30] sm:$0xff]
    %v162 = vld [vmem:[#allocation2 + $0x38] sm:$0xff]
    %v163 = vld [vmem:[#allocation2 + $0x40] sm:$0xff]
    %v164 = vld [vmem:[#allocation2 + $0x48] sm:$0xff]
    %v165 = vld [vmem:[#allocation2 + $0x50] sm:$0xff]
    %v166 = vld [vmem:[#allocation2 + $0x58] sm:$0xff]
    %v167 = vld [vmem:[#allocation2 + $0x60] sm:$0xff]
    %v168 = vld [vmem:[#allocation2 + $0x68] sm:$0xff]
    %v169 = vld [vmem:[#allocation2 + $0x70] sm:$0xff]
    %v170 = vld [vmem:[#allocation2 + $0x78] sm:$0xff]
    %v171 = vld [vmem:[#allocation2 + $0x80] sm:$0xff]
    %v172 = vld [vmem:[#allocation2 + $0x88] sm:$0xff]
    %v173 = vld [vmem:[#allocation2 + $0x90] sm:$0xff]
    %v174 = vld [vmem:[#allocation2 + $0x98] sm:$0xff]
    %v175 = vld [vmem:[#allocation2 + $0xa0] sm:$0xff]
    %v176 = vld [vmem:[#allocation2 + $0xa8] sm:$0xff]
    %v177 = vld [vmem:[#allocation2 + $0xb0] sm:$0xff]
    %v178 = vld [vmem:[#allocation2 + $0xb8] sm:$0xff]
    %v179 = vld [vmem:[#allocation2 + $0xc0] sm:$0xff]
    %v180 = vld [vmem:[#allocation2 + $0xc8] sm:$0xff]
    %v181 = vld [vmem:[#allocation2 + $0xd0] sm:$0xff]
    %v182 = vld [vmem:[#allocation2 + $0xd8] sm:$0xff]
    %v183 = vld [vmem:[#allocation2 + $0xe0] sm:$0xff]
    %v184 = vld [vmem:[#allocation2 + $0xe8] sm:$0xff]
    %v185 = vld [vmem:[#allocation2 + $0xf0] sm:$0xff]
    %v186 = vld [vmem:[#allocation2 + $0xf8] sm:$0xff]
    %v187 = vld [vmem:[#allocation2 + $0x100] sm:$0xff]
    %v188 = vld [vmem:[#allocation2 + $0x108] sm:$0xff]
    %v189 = vld [vmem:[#allocation2 + $0x110] sm:$0xff]
    %v190 = vld [vmem:[#allocation2 + $0x118] sm:$0xff]
    %v191 = vld [vmem:[#allocation2 + $0x120] sm:$0xff]
    %v192 = vld [vmem:[#allocation2 + $0x128] sm:$0xff]
    %v193 = vld [vmem:[#allocation2 + $0x130] sm:$0xff]
    %v194 = vld [vmem:[#allocation2 + $0x138] sm:$0xff]
    %v195 = vld [vmem:[#allocation2 + $0x140] sm:$0xff]
    %v196 = vld [vmem:[#allocation2 + $0x148] sm:$0xff]
    %v197 = vld [vmem:[#allocation2 + $0x150] sm:$0xff]
    %v198 = vld [vmem:[#allocation2 + $0x158] sm:$0xff]
    %v199 = vld [vmem:[#allocation2 + $0x160] sm:$0xff]
    %v200 = vld [vmem:[#allocation2 + $0x168] sm:$0xff]
    %v201 = vld [vmem:[#allocation2 + $0x170] sm:$0xff]
    %v202 = vld [vmem:[#allocation2 + $0x178] sm:$0xff]
    %v203 = vld [vmem:[#allocation2 + $0x180] sm:$0xff]
    %v204 = vld [vmem:[#allocation2 + $0x188] sm:$0xff]
    %v205 = vld [vmem:[#allocation2 + $0x190] sm:$0xff]
    %v206 = vld [vmem:[#allocation2 + $0x198] sm:$0xff]
    %v207 = vld [vmem:[#allocation2 + $0x1a0] sm:$0xff]
    %v208 = vld [vmem:[#allocation2 + $0x1a8] sm:$0xff]
    %v209 = vld [vmem:[#allocation2 + $0x1b0] sm:$0xff]
    %v210 = vld [vmem:[#allocation2 + $0x1b8] sm:$0xff]
    %v211 = vld [vmem:[#allocation2 + $0x1c0] sm:$0xff]
    %v212 = vld [vmem:[#allocation2 + $0x1c8] sm:$0xff]
    %v213 = vld [vmem:[#allocation2 + $0x1d0] sm:$0xff]
    %v214 = vld [vmem:[#allocation2 + $0x1d8] sm:$0xff]
    %v215 = vld [vmem:[#allocation2 + $0x1e0] sm:$0xff]
    %v216 = vld [vmem:[#allocation2 + $0x1e8] sm:$0xff]
    %v217 = vld [vmem:[#allocation2 + $0x1f0] sm:$0xff]
    %v218 = vld [vmem:[#allocation2 + $0x1f8] sm:$0xff]
    %v219 = vld [vmem:[#allocation2 + $0x200] sm:$0xff]
    %v220 = vld [vmem:[#allocation2 + $0x208] sm:$0xff]
    %v221 = vld [vmem:[#allocation2 + $0x210] sm:$0xff]
    %v222 = vld [vmem:[#allocation2 + $0x218] sm:$0xff]
    %v223 = vld [vmem:[#allocation2 + $0x220] sm:$0xff]
    %v224 = vld [vmem:[#allocation2 + $0x228] sm:$0xff]
    %v225 = vld [vmem:[#allocation2 + $0x230] sm:$0xff]
    %v226 = vld [vmem:[#allocation2 + $0x238] sm:$0xff]
    %v227 = vld [vmem:[#allocation2 + $0x240] sm:$0xff]
    %v228 = vld [vmem:[#allocation2 + $0x248] sm:$0xff]
    %v229 = vld [vmem:[#allocation2 + $0x250] sm:$0xff]
    %v230 = vld [vmem:[#allocation2 + $0x258] sm:$0xff]
    %v231 = vld [vmem:[#allocation2 + $0x260] sm:$0xff]
    %v232 = vld [vmem:[#allocation2 + $0x268] sm:$0xff]
    %v233 = vld [vmem:[#allocation2 + $0x270] sm:$0xff]
    %v234 = vld [vmem:[#allocation2 + $0x278] sm:$0xff]
    %v235 = vld [vmem:[#allocation2 + $0x280] sm:$0xff]
    %v236 = vld [vmem:[#allocation2 + $0x288] sm:$0xff]
    %v237 = vld [vmem:[#allocation2 + $0x290] sm:$0xff]
    %v238 = vld [vmem:[#allocation2 + $0x298] sm:$0xff]
    %v239 = vld [vmem:[#allocation2 + $0x2a0] sm:$0xff]
    %v240 = vld [vmem:[#allocation2 + $0x2a8] sm:$0xff]
    %v241 = vld [vmem:[#allocation2 + $0x2b0] sm:$0xff]
    %v242 = vld [vmem:[#allocation2 + $0x2b8] sm:$0xff]
    %v243 = vld [vmem:[#allocation2 + $0x2c0] sm:$0xff]
    %v244 = vld [vmem:[#allocation2 + $0x2c8] sm:$0xff]
    %v245 = vld [vmem:[#allocation2 + $0x2d0] sm:$0xff]
    %v246 = vld [vmem:[#allocation2 + $0x2d8] sm:$0xff]
    %v247 = vld [vmem:[#allocation2 + $0x2e0] sm:$0xff]
    %v248 = vld [vmem:[#allocation2 + $0x2e8] sm:$0xff]
    %v249 = vld [vmem:[#allocation2 + $0x2f0] sm:$0xff]
    %v250 = vld [vmem:[#allocation2 + $0x2f8] sm:$0xff]
    %v251 = vld [vmem:[#allocation3] sm:$0xf]
    %v252 = vld [vmem:[#allocation3 + $0x4] sm:$0xf]
    %v253 = vld [vmem:[#allocation3 + $0x8] sm:$0xf]
    %v254 = vld [vmem:[#allocation3 + $0xc] sm:$0xf]
    %v255 = vld [vmem:[#allocation3 + $0x10] sm:$0xf]
    %v256 = vld [vmem:[#allocation3 + $0x14] sm:$0xf]
    %v257 = vld [vmem:[#allocation3 + $0x18] sm:$0xf]
    %v258 = vld [vmem:[#allocation3 + $0x1c] sm:$0xf]
    %v259 = vld [vmem:[#allocation3 + $0x20] sm:$0xf]
    %v260 = vld [vmem:[#allocation3 + $0x24] sm:$0xf]
    %v261 = vld [vmem:[#allocation3 + $0x28] sm:$0xf]
    %v262 = vld [vmem:[#allocation3 + $0x2c] sm:$0xf]
    %v263 = vld [vmem:[#allocation3 + $0x30] sm:$0xf]
    %v264 = vld [vmem:[#allocation3 + $0x34] sm:$0xf]
    %v265 = vld [vmem:[#allocation3 + $0x38] sm:$0xf]
    %v266 = vld [vmem:[#allocation3 + $0x3c] sm:$0xf]
    %v267 = vld [vmem:[#allocation3 + $0x40] sm:$0xf]
    %v268 = vld [vmem:[#allocation3 + $0x44] sm:$0xf]
    %v269 = vld [vmem:[#allocation3 + $0x48] sm:$0xf]
    %v270 = vld [vmem:[#allocation3 + $0x4c] sm:$0xf]
    %v271 = vld [vmem:[#allocation3 + $0x50] sm:$0xf]
    %v272 = vld [vmem:[#allocation3 + $0x54] sm:$0xf]
    %v273 = vld [vmem:[#allocation3 + $0x58] sm:$0xf]
    %v274 = vld [vmem:[#allocation3 + $0x5c] sm:$0xf]
    %v275 = vld [vmem:[#allocation3 + $0x60] sm:$0xf]
    %v276 = vld [vmem:[#allocation3 + $0x64] sm:$0xf]
    %v277 = vld [vmem:[#allocation3 + $0x68] sm:$0xf]
    %v278 = vld [vmem:[#allocation3 + $0x6c] sm:$0xf]
    %v279 = vld [vmem:[#allocation3 + $0x70] sm:$0xf]
    %v280 = vld [vmem:[#allocation3 + $0x74] sm:$0xf]
    %v281 = vld [vmem:[#allocation3 + $0x78] sm:$0xf]
    %v282 = vld [vmem:[#allocation3 + $0x7c] sm:$0xf]
    %v283 = vld [vmem:[#allocation6] sm:$0xff]
    %v284 = vld [vmem:[#allocation6 + $0x8] sm:$0xf]
    %v285 = vld [vmem:[#allocation6 + $0xc] sm:$0xff]
    %v286 = vld [vmem:[#allocation6 + $0x14] sm:$0xf]
    %v287 = vld [vmem:[#allocation6 + $0x18] sm:$0xff]
    %v288 = vld [vmem:[#allocation6 + $0x20] sm:$0xf]
    %v289 = vld [vmem:[#allocation6 + $0x24] sm:$0xff]
    %v290 = vld [vmem:[#allocation6 + $0x2c] sm:$0xf]
    %v291 = vld [vmem:[#allocation6 + $0x30] sm:$0xff]
    %v292 = vld [vmem:[#allocation6 + $0x38] sm:$0xf]
    %v293 = vld [vmem:[#allocation6 + $0x3c] sm:$0xff]
    %v294 = vld [vmem:[#allocation6 + $0x44] sm:$0xf]
    %v295 = vld [vmem:[#allocation6 + $0x48] sm:$0xff]
    %v296 = vld [vmem:[#allocation6 + $0x50] sm:$0xf]
    %v297 = vld [vmem:[#allocation6 + $0x54] sm:$0xff]
    %v298 = vld [vmem:[#allocation6 + $0x5c] sm:$0xf]
    %v299 = vld [vmem:[#allocation6 + $0x60] sm:$0xff]
    %v300 = vld [vmem:[#allocation6 + $0x68] sm:$0xf]
    %v301 = vld [vmem:[#allocation6 + $0x6c] sm:$0xff]
    %v302 = vld [vmem:[#allocation6 + $0x74] sm:$0xf]
    %v303 = vld [vmem:[#allocation6 + $0x78] sm:$0xff]
    %v304 = vld [vmem:[#allocation6 + $0x80] sm:$0xf]
    %v305 = vld [vmem:[#allocation6 + $0x84] sm:$0xff]
    %v306 = vld [vmem:[#allocation6 + $0x8c] sm:$0xf]
    %v307 = vld [vmem:[#allocation6 + $0x90] sm:$0xff]
    %v308 = vld [vmem:[#allocation6 + $0x98] sm:$0xf]
    %v309 = vld [vmem:[#allocation6 + $0x9c] sm:$0xff]
    %v310 = vld [vmem:[#allocation6 + $0xa4] sm:$0xf]
    %v311 = vld [vmem:[#allocation6 + $0xa8] sm:$0xff]
    %v312 = vld [vmem:[#allocation6 + $0xb0] sm:$0xf]
    %v313 = vld [vmem:[#allocation6 + $0xb4] sm:$0xff]
    %v314 = vld [vmem:[#allocation6 + $0xbc] sm:$0xf]
    %v347 = vunpack.c.l.b16 %v251
    %v348 = vunpack.c.l.b16 %v252
    %v349 = vunpack.c.l.b16 %v253
    %v350 = vunpack.c.l.b16 %v254
    %v351 = vunpack.c.l.b16 %v255
    %v352 = vunpack.c.l.b16 %v256
    %v353 = vunpack.c.l.b16 %v257
    %v354 = vunpack.c.l.b16 %v258
    %v355 = vunpack.c.l.b16 %v259
    %v356 = vunpack.c.l.b16 %v260
    %v357 = vunpack.c.l.b16 %v261
    %v358 = vunpack.c.l.b16 %v262
    %v359 = vunpack.c.l.b16 %v263
    %v360 = vunpack.c.l.b16 %v264
    %v361 = vunpack.c.l.b16 %v265
    %v362 = vunpack.c.l.b16 %v266
    %v363 = vunpack.c.l.b16 %v267
    %v364 = vunpack.c.l.b16 %v268
    %v365 = vunpack.c.l.b16 %v269
    %v366 = vunpack.c.l.b16 %v270
    %v367 = vunpack.c.l.b16 %v271
    %v368 = vunpack.c.l.b16 %v272
    %v369 = vunpack.c.l.b16 %v273
    %v370 = vunpack.c.l.b16 %v274
    %v371 = vunpack.c.l.b16 %v275
    %v372 = vunpack.c.l.b16 %v276
    %v373 = vunpack.c.l.b16 %v277
    %v374 = vunpack.c.l.b16 %v278
    %v375 = vunpack.c.l.b16 %v279
    %v376 = vunpack.c.l.b16 %v280
    %v377 = vunpack.c.l.b16 %v281
    %v378 = vunpack.c.l.b16 %v282
    %v379 = vpack.c.b16 %v348, %v347
    %v380 = vpack.c.b16 %v350, %v349
    %v381 = vpack.c.b16 %v352, %v351
    %v382 = vpack.c.b16 %v354, %v353
    %v383 = vpack.c.b16 %v356, %v355
    %v384 = vpack.c.b16 %v358, %v357
    %v385 = vpack.c.b16 %v360, %v359
    %v386 = vpack.c.b16 %v362, %v361
    %v387 = vpack.c.b16 %v364, %v363
    %v388 = vpack.c.b16 %v366, %v365
    %v389 = vpack.c.b16 %v368, %v367
    %v390 = vpack.c.b16 %v370, %v369
    %v391 = vpack.c.b16 %v372, %v371
    %v392 = vpack.c.b16 %v374, %v373
    %v393 = vpack.c.b16 %v376, %v375
    %v394 = vpack.c.b16 %v378, %v377
    %v443 = vunpack.c.l.b16 %v283
    %v444 = vunpack.c.h.b16 %v283
    %v445 = vunpack.c.l.b16 %v284
    %v446 = vunpack.c.l.b16 %v285
    %v447 = vunpack.c.h.b16 %v285
    %v448 = vunpack.c.l.b16 %v286
    %v449 = vunpack.c.l.b16 %v287
    %v450 = vunpack.c.h.b16 %v287
    %v451 = vunpack.c.l.b16 %v288
    %v452 = vunpack.c.l.b16 %v289
    %v453 = vunpack.c.h.b16 %v289
    %v454 = vunpack.c.l.b16 %v290
    %v455 = vunpack.c.l.b16 %v291
    %v456 = vunpack.c.h.b16 %v291
    %v457 = vunpack.c.l.b16 %v292
    %v458 = vunpack.c.l.b16 %v293
    %v459 = vunpack.c.h.b16 %v293
    %v460 = vunpack.c.l.b16 %v294
    %v461 = vunpack.c.l.b16 %v295
    %v462 = vunpack.c.h.b16 %v295
    %v463 = vunpack.c.l.b16 %v296
    %v464 = vunpack.c.l.b16 %v297
    %v465 = vunpack.c.h.b16 %v297
    %v466 = vunpack.c.l.b16 %v298
    %v467 = vunpack.c.l.b16 %v299
    %v468 = vunpack.c.h.b16 %v299
    %v469 = vunpack.c.l.b16 %v300
    %v470 = vunpack.c.l.b16 %v301
    %v471 = vunpack.c.h.b16 %v301
    %v472 = vunpack.c.l.b16 %v302
    %v473 = vunpack.c.l.b16 %v303
    %v474 = vunpack.c.h.b16 %v303
    %v475 = vunpack.c.l.b16 %v304
    %v476 = vunpack.c.l.b16 %v305
    %v477 = vunpack.c.h.b16 %v305
    %v478 = vunpack.c.l.b16 %v306
    %v479 = vunpack.c.l.b16 %v307
    %v480 = vunpack.c.h.b16 %v307
    %v481 = vunpack.c.l.b16 %v308
    %v482 = vunpack.c.l.b16 %v309
    %v483 = vunpack.c.h.b16 %v309
    %v484 = vunpack.c.l.b16 %v310
    %v485 = vunpack.c.l.b16 %v311
    %v486 = vunpack.c.h.b16 %v311
    %v487 = vunpack.c.l.b16 %v312
    %v488 = vunpack.c.l.b16 %v313
    %v489 = vunpack.c.h.b16 %v313
    %v490 = vunpack.c.l.b16 %v314
    %v491 = vpack.c.b16 %v446, %v443
    %v492 = vpack.c.b16 %v447, %v444
    %v493 = vpack.c.b16 %v448, %v445
    %v494 = vpack.c.b16 %v452, %v449
    %v495 = vpack.c.b16 %v453, %v450
    %v496 = vpack.c.b16 %v454, %v451
    %v497 = vpack.c.b16 %v458, %v455
    %v498 = vpack.c.b16 %v459, %v456
    %v499 = vpack.c.b16 %v460, %v457
    %v500 = vpack.c.b16 %v464, %v461
    %v501 = vpack.c.b16 %v465, %v462
    %v502 = vpack.c.b16 %v466, %v463
    %v503 = vpack.c.b16 %v470, %v467
    %v504 = vpack.c.b16 %v471, %v468
    %v505 = vpack.c.b16 %v472, %v469
    %v506 = vpack.c.b16 %v476, %v473
    %v507 = vpack.c.b16 %v477, %v474
    %v508 = vpack.c.b16 %v478, %v475
    %v509 = vpack.c.b16 %v482, %v479
    %v510 = vpack.c.b16 %v483, %v480
    %v511 = vpack.c.b16 %v484, %v481
    %v512 = vpack.c.b16 %v488, %v485
    %v513 = vpack.c.b16 %v489, %v486
    %v514 = vpack.c.b16 %v490, %v487
    %539 = vmatprep.subr.bf16.mxu0 %v492
    %540 = vmatpush1.bf16.msra.mxu0 %v491
    %541 = vmatprep.subr.bf16.mxu0 %v495
    %542 = vmatpush1.bf16.msra.mxu0 %v494
    %543 = vmatprep.subr.bf16.mxu0 %v498
    %544 = vmatpush1.bf16.msra.mxu0 %v497
    %545 = vmatprep.subr.bf16.mxu0 %v501
    %546 = vmatpush1.bf16.msra.mxu0 %v500
    %547 = vmatprep.subr.bf16.mxu0 %v504
    %548 = vmatpush1.bf16.msra.mxu0 %v503
    %549 = vmatprep.subr.bf16.mxu0 %v507
    %550 = vmatpush1.bf16.msra.mxu0 %v506
    %551 = vmatprep.subr.bf16.mxu0 %v510
    %552 = vmatpush1.bf16.msra.mxu0 %v509
    %553 = vmatprep.subr.bf16.mxu0 %v513
    %554 = vmatpush1.bf16.msra.mxu0 %v512
    %555 = vmatprep.subr.bf16.mxu0 0
    %556 = vmatpush1.bf16.msra.mxu0 0
    %557 = vmatprep.subr.bf16.mxu0 0
    %558 = vmatpush1.bf16.msra.mxu0 0
    %559 = vmatprep.subr.bf16.mxu0 0
    %560 = vmatpush1.bf16.msra.mxu0 0
    %561 = vmatprep.subr.bf16.mxu0 0
    %562 = vmatpush1.bf16.msra.mxu0 0
    %563 = vmatprep.subr.bf16.mxu0 0
    %564 = vmatpush1.bf16.msra.mxu0 0
    %565 = vmatprep.subr.bf16.mxu0 0
    %566 = vmatpush1.bf16.msra.mxu0 0
    %567 = vmatprep.subr.bf16.mxu0 0
    %568 = vmatpush1.bf16.msra.mxu0 0
    %569 = vmatprep.subr.bf16.mxu0 0
    %570 = vmatpush1.bf16.msra.mxu0 0
    %571 = vmatprep.mubr.bf16.mxu0 0
    %572 = vmatmul.mubr.bf16.gmra.mrb[0].mxu0 %v379
    %v573 = vpop.f32.mrb[0].mxu0
    %v574 = vadd.f32 0.0, %v573
    %v575 = vpop.f32.mrb[0].mxu0
    %v576 = vadd.f32 0.0, %v575
    %v577 = vpop.f32.mrb[0].mxu0
    %v578 = vadd.f32 0.0, %v577
    %v579 = vpop.f32.mrb[0].mxu0
    %v580 = vadd.f32 0.0, %v579
    %581 = vmatprep.mubr.bf16.mxu0 0
    %582 = vmatmul.mubr.bf16.gmra.mrb[0].mxu0 %v380
    %v583 = vpop.f32.mrb[0].mxu0
    %v584 = vadd.f32 0.0, %v583
    %v585 = vpop.f32.mrb[0].mxu0
    %v586 = vadd.f32 0.0, %v585
    %v587 = vpop.f32.mrb[0].mxu0
    %v588 = vadd.f32 0.0, %v587
    %v589 = vpop.f32.mrb[0].mxu0
    %v590 = vadd.f32 0.0, %v589
    %591 = vmatprep.mubr.bf16.mxu0 0
    %592 = vmatmul.mubr.bf16.gmra.mrb[0].mxu0 %v381
    %v593 = vpop.f32.mrb[0].mxu0
    %v594 = vadd.f32 0.0, %v593
    %v595 = vpop.f32.mrb[0].mxu0
    %v596 = vadd.f32 0.0, %v595
    %v597 = vpop.f32.mrb[0].mxu0
    %v598 = vadd.f32 0.0, %v597
    %v599 = vpop.f32.mrb[0].mxu0
    %v600 = vadd.f32 0.0, %v599
    %601 = vmatprep.mubr.bf16.mxu0 0
    %602 = vmatmul.mubr.bf16.gmra.mrb[0].mxu0 %v382
    %v603 = vpop.f32.mrb[0].mxu0
    %v604 = vadd.f32 0.0, %v603
    %v605 = vpop.f32.mrb[0].mxu0
    %v606 = vadd.f32 0.0, %v605
    %v607 = vpop.f32.mrb[0].mxu0
    %v608 = vadd.f32 0.0, %v607
    %v609 = vpop.f32.mrb[0].mxu0
    %v610 = vadd.f32 0.0, %v609
    %611 = vmatprep.mubr.bf16.mxu0 0
    %612 = vmatmul.mubr.bf16.gmra.mrb[0].mxu0 %v383
    %v613 = vpop.f32.mrb[0].mxu0
    %v614 = vadd.f32 0.0, %v613
    %v615 = vpop.f32.mrb[0].mxu0
    %v616 = vadd.f32 0.0, %v615
    %v617 = vpop.f32.mrb[0].mxu0
    %v618 = vadd.f32 0.0, %v617
    %v619 = vpop.f32.mrb[0].mxu0
    %v620 = vadd.f32 0.0, %v619
    %621 = vmatprep.mubr.bf16.mxu0 0
    %622 = vmatmul.mubr.bf16.gmra.mrb[0].mxu0 %v384
    %v623 = vpop.f32.mrb[0].mxu0
    %v624 = vadd.f32 0.0, %v623
    %v625 = vpop.f32.mrb[0].mxu0
    %v626 = vadd.f32 0.0, %v625
    %v627 = vpop.f32.mrb[0].mxu0
    %v628 = vadd.f32 0.0, %v627
    %v629 = vpop.f32.mrb[0].mxu0
    %v630 = vadd.f32 0.0, %v629
    %631 = vmatprep.mubr.bf16.mxu0 0
    %632 = vmatmul.mubr.bf16.gmra.mrb[0].mxu0 %v385
    %v633 = vpop.f32.mrb[0].mxu0
    %v634 = vadd.f32 0.0, %v633
    %v635 = vpop.f32.mrb[0].mxu0
    %v636 = vadd.f32 0.0, %v635
    %v637 = vpop.f32.mrb[0].mxu0
    %v638 = vadd.f32 0.0, %v637
    %v639 = vpop.f32.mrb[0].mxu0
    %v640 = vadd.f32 0.0, %v639
    %641 = vmatprep.mubr.bf16.mxu0 0
    %642 = vmatmul.mubr.bf16.gmra.mrb[0].mxu0 %v386
    %v643 = vpop.f32.mrb[0].mxu0
    %v644 = vadd.f32 0.0, %v643
    %v645 = vpop.f32.mrb[0].mxu0
    %v646 = vadd.f32 0.0, %v645
    %v647 = vpop.f32.mrb[0].mxu0
    %v648 = vadd.f32 0.0, %v647
    %v649 = vpop.f32.mrb[0].mxu0
    %v650 = vadd.f32 0.0, %v649
    %651 = vmatprep.mubr.bf16.mxu0 0
    %652 = vmatmul.mubr.bf16.gmra.mrb[0].mxu0 %v387
    %v653 = vpop.f32.mrb[0].mxu0
    %v654 = vadd.f32 0.0, %v653
    %v655 = vpop.f32.mrb[0].mxu0
    %v656 = vadd.f32 0.0, %v655
    %v657 = vpop.f32.mrb[0].mxu0
    %v658 = vadd.f32 0.0, %v657
    %v659 = vpop.f32.mrb[0].mxu0
    %v660 = vadd.f32 0.0, %v659
    %661 = vmatprep.mubr.bf16.mxu0 0
    %662 = vmatmul.mubr.bf16.gmra.mrb[0].mxu0 %v388
    %v663 = vpop.f32.mrb[0].mxu0
    %v664 = vadd.f32 0.0, %v663
    %v665 = vpop.f32.mrb[0].mxu0
    %v666 = vadd.f32 0.0, %v665
    %v667 = vpop.f32.mrb[0].mxu0
    %v668 = vadd.f32 0.0, %v667
    %v669 = vpop.f32.mrb[0].mxu0
    %v670 = vadd.f32 0.0, %v669
    %671 = vmatprep.mubr.bf16.mxu0 0
    %672 = vmatmul.mubr.bf16.gmra.mrb[0].mxu0 %v389
    %v673 = vpop.f32.mrb[0].mxu0
    %v674 = vadd.f32 0.0, %v673
    %v675 = vpop.f32.mrb[0].mxu0
    %v676 = vadd.f32 0.0, %v675
    %v677 = vpop.f32.mrb[0].mxu0
    %v678 = vadd.f32 0.0, %v677
    %v679 = vpop.f32.mrb[0].mxu0
    %v680 = vadd.f32 0.0, %v679
    %681 = vmatprep.mubr.bf16.mxu0 0
    %682 = vmatmul.mubr.bf16.gmra.mrb[0].mxu0 %v390
    %v683 = vpop.f32.mrb[0].mxu0
    %v684 = vadd.f32 0.0, %v683
    %v685 = vpop.f32.mrb[0].mxu0
    %v686 = vadd.f32 0.0, %v685
    %v687 = vpop.f32.mrb[0].mxu0
    %v688 = vadd.f32 0.0, %v687
    %v689 = vpop.f32.mrb[0].mxu0
    %v690 = vadd.f32 0.0, %v689
    %691 = vmatprep.mubr.bf16.mxu0 0
    %692 = vmatmul.mubr.bf16.gmra.mrb[0].mxu0 %v391
    %v693 = vpop.f32.mrb[0].mxu0
    %v694 = vadd.f32 0.0, %v693
    %v695 = vpop.f32.mrb[0].mxu0
    %v696 = vadd.f32 0.0, %v695
    %v697 = vpop.f32.mrb[0].mxu0
    %v698 = vadd.f32 0.0, %v697
    %v699 = vpop.f32.mrb[0].mxu0
    %v700 = vadd.f32 0.0, %v699
    %701 = vmatprep.mubr.bf16.mxu0 0
    %702 = vmatmul.mubr.bf16.gmra.mrb[0].mxu0 %v392
    %v703 = vpop.f32.mrb[0].mxu0
    %v704 = vadd.f32 0.0, %v703
    %v705 = vpop.f32.mrb[0].mxu0
    %v706 = vadd.f32 0.0, %v705
    %v707 = vpop.f32.mrb[0].mxu0
    %v708 = vadd.f32 0.0, %v707
    %v709 = vpop.f32.mrb[0].mxu0
    %v710 = vadd.f32 0.0, %v709
    %711 = vmatprep.mubr.bf16.mxu0 0
    %712 = vmatmul.mubr.bf16.gmra.mrb[0].mxu0 %v393
    %v713 = vpop.f32.mrb[0].mxu0
    %v714 = vadd.f32 0.0, %v713
    %v715 = vpop.f32.mrb[0].mxu0
    %v716 = vadd.f32 0.0, %v715
    %v717 = vpop.f32.mrb[0].mxu0
    %v718 = vadd.f32 0.0, %v717
    %v719 = vpop.f32.mrb[0].mxu0
    %v720 = vadd.f32 0.0, %v719
    %721 = vmatprep.mubr.bf16.mxu0 0
    %722 = vmatmul.mubr.bf16.gmra.mrb[0].mxu0 %v394
    %v723 = vpop.f32.mrb[0].mxu0
    %v724 = vadd.f32 0.0, %v723
    %v725 = vpop.f32.mrb[0].mxu0
    %v726 = vadd.f32 0.0, %v725
    %v727 = vpop.f32.mrb[0].mxu0
    %v728 = vadd.f32 0.0, %v727
    %v729 = vpop.f32.mrb[0].mxu0
    %v730 = vadd.f32 0.0, %v729
    %731 = vdwg.mxu0
    %732 = vmatprep.subr.bf16.mxu0 0
    %733 = vmatpush1.bf16.msra.mxu0 %v493
    %734 = vmatprep.subr.bf16.mxu0 0
    %735 = vmatpush1.bf16.msra.mxu0 %v496
    %736 = vmatprep.subr.bf16.mxu0 0
    %737 = vmatpush1.bf16.msra.mxu0 %v499
    %738 = vmatprep.subr.bf16.mxu0 0
    %739 = vmatpush1.bf16.msra.mxu0 %v502
    %740 = vmatprep.subr.bf16.mxu0 0
    %741 = vmatpush1.bf16.msra.mxu0 %v505
    %742 = vmatprep.subr.bf16.mxu0 0
    %743 = vmatpush1.bf16.msra.mxu0 %v508
    %744 = vmatprep.subr.bf16.mxu0 0
    %745 = vmatpush1.bf16.msra.mxu0 %v511
    %746 = vmatprep.subr.bf16.mxu0 0
    %747 = vmatpush1.bf16.msra.mxu0 %v514
    %748 = vmatprep.subr.bf16.mxu0 0
    %749 = vmatpush1.bf16.msra.mxu0 0
    %750 = vmatprep.subr.bf16.mxu0 0
    %751 = vmatpush1.bf16.msra.mxu0 0
    %752 = vmatprep.subr.bf16.mxu0 0
    %753 = vmatpush1.bf16.msra.mxu0 0
    %754 = vmatprep.subr.bf16.mxu0 0
    %755 = vmatpush1.bf16.msra.mxu0 0
    %756 = vmatprep.subr.bf16.mxu0 0
    %757 = vmatpush1.bf16.msra.mxu0 0
    %758 = vmatprep.subr.bf16.mxu0 0
    %759 = vmatpush1.bf16.msra.mxu0 0
    %760 = vmatprep.subr.bf16.mxu0 0
    %761 = vmatpush1.bf16.msra.mxu0 0
    %762 = vmatprep.subr.bf16.mxu0 0
    %763 = vmatpush1.bf16.msra.mxu0 0
    %764 = vmatprep.mubr.bf16.mxu0 0
    %765 = vmatmul.mubr.bf16.gmra.mrb[0].mxu0 %v379
    %v766 = vpop.f32.mrb[0].mxu0
    %v767 = vadd.f32 0.0, %v766
    %v768 = vpop.f32.mrb[0].mxu0
    %v769 = vpop.f32.mrb[0].mxu0
    %v770 = vadd.f32 0.0, %v769
    %v771 = vpop.f32.mrb[0].mxu0
    %772 = vmatprep.mubr.bf16.mxu0 0
    %773 = vmatmul.mubr.bf16.gmra.mrb[0].mxu0 %v380
    %v774 = vpop.f32.mrb[0].mxu0
    %v775 = vadd.f32 0.0, %v774
    %v776 = vpop.f32.mrb[0].mxu0
    %v777 = vpop.f32.mrb[0].mxu0
    %v778 = vadd.f32 0.0, %v777
    %v779 = vpop.f32.mrb[0].mxu0
    %780 = vmatprep.mubr.bf16.mxu0 0
    %781 = vmatmul.mubr.bf16.gmra.mrb[0].mxu0 %v381
    %v782 = vpop.f32.mrb[0].mxu0
    %v783 = vadd.f32 0.0, %v782
    %v784 = vpop.f32.mrb[0].mxu0
    %v785 = vpop.f32.mrb[0].mxu0
    %v786 = vadd.f32 0.0, %v785
    %v787 = vpop.f32.mrb[0].mxu0
    %788 = vmatprep.mubr.bf16.mxu0 0
    %789 = vmatmul.mubr.bf16.gmra.mrb[0].mxu0 %v382
    %v790 = vpop.f32.mrb[0].mxu0
    %v791 = vadd.f32 0.0, %v790
    %v792 = vpop.f32.mrb[0].mxu0
    %v793 = vpop.f32.mrb[0].mxu0
    %v794 = vadd.f32 0.0, %v793
    %v795 = vpop.f32.mrb[0].mxu0
    %796 = vmatprep.mubr.bf16.mxu0 0
    %797 = vmatmul.mubr.bf16.gmra.mrb[0].mxu0 %v383
    %v798 = vpop.f32.mrb[0].mxu0
    %v799 = vadd.f32 0.0, %v798
    %v800 = vpop.f32.mrb[0].mxu0
    %v801 = vpop.f32.mrb[0].mxu0
    %v802 = vadd.f32 0.0, %v801
    %v803 = vpop.f32.mrb[0].mxu0
    %804 = vmatprep.mubr.bf16.mxu0 0
    %805 = vmatmul.mubr.bf16.gmra.mrb[0].mxu0 %v384
    %v806 = vpop.f32.mrb[0].mxu0
    %v807 = vadd.f32 0.0, %v806
    %v808 = vpop.f32.mrb[0].mxu0
    %v809 = vpop.f32.mrb[0].mxu0
    %v810 = vadd.f32 0.0, %v809
    %v811 = vpop.f32.mrb[0].mxu0
    %812 = vmatprep.mubr.bf16.mxu0 0
    %813 = vmatmul.mubr.bf16.gmra.mrb[0].mxu0 %v385
    %v814 = vpop.f32.mrb[0].mxu0
    %v815 = vadd.f32 0.0, %v814
    %v816 = vpop.f32.mrb[0].mxu0
    %v817 = vpop.f32.mrb[0].mxu0
    %v818 = vadd.f32 0.0, %v817
    %v819 = vpop.f32.mrb[0].mxu0
    %820 = vmatprep.mubr.bf16.mxu0 0
    %821 = vmatmul.mubr.bf16.gmra.mrb[0].mxu0 %v386
    %v822 = vpop.f32.mrb[0].mxu0
    %v823 = vadd.f32 0.0, %v822
    %v824 = vpop.f32.mrb[0].mxu0
    %v825 = vpop.f32.mrb[0].mxu0
    %v826 = vadd.f32 0.0, %v825
    %v827 = vpop.f32.mrb[0].mxu0
    %828 = vmatprep.mubr.bf16.mxu0 0
    %829 = vmatmul.mubr.bf16.gmra.mrb[0].mxu0 %v387
    %v830 = vpop.f32.mrb[0].mxu0
    %v831 = vadd.f32 0.0, %v830
    %v832 = vpop.f32.mrb[0].mxu0
    %v833 = vpop.f32.mrb[0].mxu0
    %v834 = vadd.f32 0.0, %v833
    %v835 = vpop.f32.mrb[0].mxu0
    %836 = vmatprep.mubr.bf16.mxu0 0
    %837 = vmatmul.mubr.bf16.gmra.mrb[0].mxu0 %v388
    %v838 = vpop.f32.mrb[0].mxu0
    %v839 = vadd.f32 0.0, %v838
    %v840 = vpop.f32.mrb[0].mxu0
    %v841 = vpop.f32.mrb[0].mxu0
    %v842 = vadd.f32 0.0, %v841
    %v843 = vpop.f32.mrb[0].mxu0
    %844 = vmatprep.mubr.bf16.mxu0 0
    %845 = vmatmul.mubr.bf16.gmra.mrb[0].mxu0 %v389
    %v846 = vpop.f32.mrb[0].mxu0
    %v847 = vadd.f32 0.0, %v846
    %v848 = vpop.f32.mrb[0].mxu0
    %v849 = vpop.f32.mrb[0].mxu0
    %v850 = vadd.f32 0.0, %v849
    %v851 = vpop.f32.mrb[0].mxu0
    %852 = vmatprep.mubr.bf16.mxu0 0
    %853 = vmatmul.mubr.bf16.gmra.mrb[0].mxu0 %v390
    %v854 = vpop.f32.mrb[0].mxu0
    %v855 = vadd.f32 0.0, %v854
    %v856 = vpop.f32.mrb[0].mxu0
    %v857 = vpop.f32.mrb[0].mxu0
    %v858 = vadd.f32 0.0, %v857
    %v859 = vpop.f32.mrb[0].mxu0
    %860 = vmatprep.mubr.bf16.mxu0 0
    %861 = vmatmul.mubr.bf16.gmra.mrb[0].mxu0 %v391
    %v862 = vpop.f32.mrb[0].mxu0
    %v863 = vadd.f32 0.0, %v862
    %v864 = vpop.f32.mrb[0].mxu0
    %v865 = vpop.f32.mrb[0].mxu0
    %v866 = vadd.f32 0.0, %v865
    %v867 = vpop.f32.mrb[0].mxu0
    %868 = vmatprep.mubr.bf16.mxu0 0
    %869 = vmatmul.mubr.bf16.gmra.mrb[0].mxu0 %v392
    %v870 = vpop.f32.mrb[0].mxu0
    %v871 = vadd.f32 0.0, %v870
    %v872 = vpop.f32.mrb[0].mxu0
    %v873 = vpop.f32.mrb[0].mxu0
    %v874 = vadd.f32 0.0, %v873
    %v875 = vpop.f32.mrb[0].mxu0
    %876 = vmatprep.mubr.bf16.mxu0 0
    %877 = vmatmul.mubr.bf16.gmra.mrb[0].mxu0 %v393
    %v878 = vpop.f32.mrb[0].mxu0
    %v879 = vadd.f32 0.0, %v878
    %v880 = vpop.f32.mrb[0].mxu0
    %v881 = vpop.f32.mrb[0].mxu0
    %v882 = vadd.f32 0.0, %v881
    %v883 = vpop.f32.mrb[0].mxu0
    %884 = vmatprep.mubr.bf16.mxu0 0
    %885 = vmatmul.mubr.bf16.gmra.mrb[0].mxu0 %v394
    %v886 = vpop.f32.mrb[0].mxu0
    %v887 = vadd.f32 0.0, %v886
    %v888 = vpop.f32.mrb[0].mxu0
    %v889 = vpop.f32.mrb[0].mxu0
    %v890 = vadd.f32 0.0, %v889
    %v891 = vpop.f32.mrb[0].mxu0
    %892 = vdwg.mxu0
    %v893 = vadd.f32 %v155, %v574
    %v894 = vadd.f32 %v156, %v576
    %v895 = vadd.f32 %v157, %v767
    %v896 = vadd.f32 %v158, %v578
    %v897 = vadd.f32 %v159, %v580
    %v898 = vadd.f32 %v160, %v770
    %v899 = vadd.f32 %v161, %v584
    %v900 = vadd.f32 %v162, %v586
    %v901 = vadd.f32 %v163, %v775
    %v902 = vadd.f32 %v164, %v588
    %v903 = vadd.f32 %v165, %v590
    %v904 = vadd.f32 %v166, %v778
    %v905 = vadd.f32 %v167, %v594
    %v906 = vadd.f32 %v168, %v596
    %v907 = vadd.f32 %v169, %v783
    %v908 = vadd.f32 %v170, %v598
    %v909 = vadd.f32 %v171, %v600
    %v910 = vadd.f32 %v172, %v786
    %v911 = vadd.f32 %v173, %v604
    %v912 = vadd.f32 %v174, %v606
    %v913 = vadd.f32 %v175, %v791
    %v914 = vadd.f32 %v176, %v608
    %v915 = vadd.f32 %v177, %v610
    %v916 = vadd.f32 %v178, %v794
    %v917 = vadd.f32 %v179, %v614
    %v918 = vadd.f32 %v180, %v616
    %v919 = vadd.f32 %v181, %v799
    %v920 = vadd.f32 %v182, %v618
    %v921 = vadd.f32 %v183, %v620
    %v922 = vadd.f32 %v184, %v802
    %v923 = vadd.f32 %v185, %v624
    %v924 = vadd.f32 %v186, %v626
    %v925 = vadd.f32 %v187, %v807
    %v926 = vadd.f32 %v188, %v628
    %v927 = vadd.f32 %v189, %v630
    %v928 = vadd.f32 %v190, %v810
    %v929 = vadd.f32 %v191, %v634
    %v930 = vadd.f32 %v192, %v636
    %v931 = vadd.f32 %v193, %v815
    %v932 = vadd.f32 %v194, %v638
    %v933 = vadd.f32 %v195, %v640
    %v934 = vadd.f32 %v196, %v818
    %v935 = vadd.f32 %v197, %v644
    %v936 = vadd.f32 %v198, %v646
    %v937 = vadd.f32 %v199, %v823
    %v938 = vadd.f32 %v200, %v648
    %v939 = vadd.f32 %v201, %v650
    %v940 = vadd.f32 %v202, %v826
    %v941 = vadd.f32 %v203, %v654
    %v942 = vadd.f32 %v204, %v656
    %v943 = vadd.f32 %v205, %v831
    %v944 = vadd.f32 %v206, %v658
    %v945 = vadd.f32 %v207, %v660
    %v946 = vadd.f32 %v208, %v834
    %v947 = vadd.f32 %v209, %v664
    %v948 = vadd.f32 %v210, %v666
    %v949 = vadd.f32 %v211, %v839
    %v950 = vadd.f32 %v212, %v668
    %v951 = vadd.f32 %v213, %v670
    %v952 = vadd.f32 %v214, %v842
    %v953 = vadd.f32 %v215, %v674
    %v954 = vadd.f32 %v216, %v676
    %v955 = vadd.f32 %v217, %v847
    %v956 = vadd.f32 %v218, %v678
    %v957 = vadd.f32 %v219, %v680
    %v958 = vadd.f32 %v220, %v850
    %v959 = vadd.f32 %v221, %v684
    %v960 = vadd.f32 %v222, %v686
    %v961 = vadd.f32 %v223, %v855
    %v962 = vadd.f32 %v224, %v688
    %v963 = vadd.f32 %v225, %v690
    %v964 = vadd.f32 %v226, %v858
    %v965 = vadd.f32 %v227, %v694
    %v966 = vadd.f32 %v228, %v696
    %v967 = vadd.f32 %v229, %v863
    %v968 = vadd.f32 %v230, %v698
    %v969 = vadd.f32 %v231, %v700
    %v970 = vadd.f32 %v232, %v866
    %v971 = vadd.f32 %v233, %v704
    %v972 = vadd.f32 %v234, %v706
    %v973 = vadd.f32 %v235, %v871
    %v974 = vadd.f32 %v236, %v708
    %v975 = vadd.f32 %v237, %v710
    %v976 = vadd.f32 %v238, %v874
    %v977 = vadd.f32 %v239, %v714
    %v978 = vadd.f32 %v240, %v716
    %v979 = vadd.f32 %v241, %v879
    %v980 = vadd.f32 %v242, %v718
    %v981 = vadd.f32 %v243, %v720
    %v982 = vadd.f32 %v244, %v882
    %v983 = vadd.f32 %v245, %v724
    %v984 = vadd.f32 %v246, %v726
    %v985 = vadd.f32 %v247, %v887
    %v986 = vadd.f32 %v248, %v728
    %v987 = vadd.f32 %v249, %v730
    %v988 = vadd.f32 %v250, %v890
    %989 = vst [vmem:[#allocation2] sm:$0xff] %v893
    %990 = vst [vmem:[#allocation2 + $0x8] sm:$0xff] %v894
    %991 = vst [vmem:[#allocation2 + $0x10] sm:$0xff] %v895
    %992 = vst [vmem:[#allocation2 + $0x18] sm:$0xff] %v896
    %993 = vst [vmem:[#allocation2 + $0x20] sm:$0xff] %v897
    %994 = vst [vmem:[#allocation2 + $0x28] sm:$0xff] %v898
    %995 = vst [vmem:[#allocation2 + $0x30] sm:$0xff] %v899
    %996 = vst [vmem:[#allocation2 + $0x38] sm:$0xff] %v900
    %997 = vst [vmem:[#allocation2 + $0x40] sm:$0xff] %v901
    %998 = vst [vmem:[#allocation2 + $0x48] sm:$0xff] %v902
    %999 = vst [vmem:[#allocation2 + $0x50] sm:$0xff] %v903
    %1000 = vst [vmem:[#allocation2 + $0x58] sm:$0xff] %v904
    %1001 = vst [vmem:[#allocation2 + $0x60] sm:$0xff] %v905
    %1002 = vst [vmem:[#allocation2 + $0x68] sm:$0xff] %v906
    %1003 = vst [vmem:[#allocation2 + $0x70] sm:$0xff] %v907
    %1004 = vst [vmem:[#allocation2 + $0x78] sm:$0xff] %v908
    %1005 = vst [vmem:[#allocation2 + $0x80] sm:$0xff] %v909
    %1006 = vst [vmem:[#allocation2 + $0x88] sm:$0xff] %v910
    %1007 = vst [vmem:[#allocation2 + $0x90] sm:$0xff] %v911
    %1008 = vst [vmem:[#allocation2 + $0x98] sm:$0xff] %v912
    %1009 = vst [vmem:[#allocation2 + $0xa0] sm:$0xff] %v913
    %1010 = vst [vmem:[#allocation2 + $0xa8] sm:$0xff] %v914
    %1011 = vst [vmem:[#allocation2 + $0xb0] sm:$0xff] %v915
    %1012 = vst [vmem:[#allocation2 + $0xb8] sm:$0xff] %v916
    %1013 = vst [vmem:[#allocation2 + $0xc0] sm:$0xff] %v917
    %1014 = vst [vmem:[#allocation2 + $0xc8] sm:$0xff] %v918
    %1015 = vst [vmem:[#allocation2 + $0xd0] sm:$0xff] %v919
    %1016 = vst [vmem:[#allocation2 + $0xd8] sm:$0xff] %v920
    %1017 = vst [vmem:[#allocation2 + $0xe0] sm:$0xff] %v921
    %1018 = vst [vmem:[#allocation2 + $0xe8] sm:$0xff] %v922
    %1019 = vst [vmem:[#allocation2 + $0xf0] sm:$0xff] %v923
    %1020 = vst [vmem:[#allocation2 + $0xf8] sm:$0xff] %v924
    %1021 = vst [vmem:[#allocation2 + $0x100] sm:$0xff] %v925
    %1022 = vst [vmem:[#allocation2 + $0x108] sm:$0xff] %v926
    %1023 = vst [vmem:[#allocation2 + $0x110] sm:$0xff] %v927
    %1024 = vst [vmem:[#allocation2 + $0x118] sm:$0xff] %v928
    %1025 = vst [vmem:[#allocation2 + $0x120] sm:$0xff] %v929
    %1026 = vst [vmem:[#allocation2 + $0x128] sm:$0xff] %v930
    %1027 = vst [vmem:[#allocation2 + $0x130] sm:$0xff] %v931
    %1028 = vst [vmem:[#allocation2 + $0x138] sm:$0xff] %v932
    %1029 = vst [vmem:[#allocation2 + $0x140] sm:$0xff] %v933
    %1030 = vst [vmem:[#allocation2 + $0x148] sm:$0xff] %v934
    %1031 = vst [vmem:[#allocation2 + $0x150] sm:$0xff] %v935
    %1032 = vst [vmem:[#allocation2 + $0x158] sm:$0xff] %v936
    %1033 = vst [vmem:[#allocation2 + $0x160] sm:$0xff] %v937
    %1034 = vst [vmem:[#allocation2 + $0x168] sm:$0xff] %v938
    %1035 = vst [vmem:[#allocation2 + $0x170] sm:$0xff] %v939
    %1036 = vst [vmem:[#allocation2 + $0x178] sm:$0xff] %v940
    %1037 = vst [vmem:[#allocation2 + $0x180] sm:$0xff] %v941
    %1038 = vst [vmem:[#allocation2 + $0x188] sm:$0xff] %v942
    %1039 = vst [vmem:[#allocation2 + $0x190] sm:$0xff] %v943
    %1040 = vst [vmem:[#allocation2 + $0x198] sm:$0xff] %v944
    %1041 = vst [vmem:[#allocation2 + $0x1a0] sm:$0xff] %v945
    %1042 = vst [vmem:[#allocation2 + $0x1a8] sm:$0xff] %v946
    %1043 = vst [vmem:[#allocation2 + $0x1b0] sm:$0xff] %v947
    %1044 = vst [vmem:[#allocation2 + $0x1b8] sm:$0xff] %v948
    %1045 = vst [vmem:[#allocation2 + $0x1c0] sm:$0xff] %v949
    %1046 = vst [vmem:[#allocation2 + $0x1c8] sm:$0xff] %v950
    %1047 = vst [vmem:[#allocation2 + $0x1d0] sm:$0xff] %v951
    %1048 = vst [vmem:[#allocation2 + $0x1d8] sm:$0xff] %v952
    %1049 = vst [vmem:[#allocation2 + $0x1e0] sm:$0xff] %v953
    %1050 = vst [vmem:[#allocation2 + $0x1e8] sm:$0xff] %v954
    %1051 = vst [vmem:[#allocation2 + $0x1f0] sm:$0xff] %v955
    %1052 = vst [vmem:[#allocation2 + $0x1f8] sm:$0xff] %v956
    %1053 = vst [vmem:[#allocation2 + $0x200] sm:$0xff] %v957
    %1054 = vst [vmem:[#allocation2 + $0x208] sm:$0xff] %v958
    %1055 = vst [vmem:[#allocation2 + $0x210] sm:$0xff] %v959
    %1056 = vst [vmem:[#allocation2 + $0x218] sm:$0xff] %v960
    %1057 = vst [vmem:[#allocation2 + $0x220] sm:$0xff] %v961
    %1058 = vst [vmem:[#allocation2 + $0x228] sm:$0xff] %v962
    %1059 = vst [vmem:[#allocation2 + $0x230] sm:$0xff] %v963
    %1060 = vst [vmem:[#allocation2 + $0x238] sm:$0xff] %v964
    %1061 = vst [vmem:[#allocation2 + $0x240] sm:$0xff] %v965
    %1062 = vst [vmem:[#allocation2 + $0x248] sm:$0xff] %v966
    %1063 = vst [vmem:[#allocation2 + $0x250] sm:$0xff] %v967
    %1064 = vst [vmem:[#allocation2 + $0x258] sm:$0xff] %v968
    %1065 = vst [vmem:[#allocation2 + $0x260] sm:$0xff] %v969
    %1066 = vst [vmem:[#allocation2 + $0x268] sm:$0xff] %v970
    %1067 = vst [vmem:[#allocation2 + $0x270] sm:$0xff] %v971
    %1068 = vst [vmem:[#allocation2 + $0x278] sm:$0xff] %v972
    %1069 = vst [vmem:[#allocation2 + $0x280] sm:$0xff] %v973
    %1070 = vst [vmem:[#allocation2 + $0x288] sm:$0xff] %v974
    %1071 = vst [vmem:[#allocation2 + $0x290] sm:$0xff] %v975
    %1072 = vst [vmem:[#allocation2 + $0x298] sm:$0xff] %v976
    %1073 = vst [vmem:[#allocation2 + $0x2a0] sm:$0xff] %v977
    %1074 = vst [vmem:[#allocation2 + $0x2a8] sm:$0xff] %v978
    %1075 = vst [vmem:[#allocation2 + $0x2b0] sm:$0xff] %v979
    %1076 = vst [vmem:[#allocation2 + $0x2b8] sm:$0xff] %v980
    %1077 = vst [vmem:[#allocation2 + $0x2c0] sm:$0xff] %v981
    %1078 = vst [vmem:[#allocation2 + $0x2c8] sm:$0xff] %v982
    %1079 = vst [vmem:[#allocation2 + $0x2d0] sm:$0xff] %v983
    %1080 = vst [vmem:[#allocation2 + $0x2d8] sm:$0xff] %v984
    %1081 = vst [vmem:[#allocation2 + $0x2e0] sm:$0xff] %v985
    %1082 = vst [vmem:[#allocation2 + $0x2e8] sm:$0xff] %v986
    %1083 = vst [vmem:[#allocation2 + $0x2f0] sm:$0xff] %v987
    %1084 = vst [vmem:[#allocation2 + $0x2f8] sm:$0xff] %v988
    // Predicated region
    $region30: #{tpu_custom_call.1} parent=1 // pred_check
      %p1085 = pneg %p55
    $region31: #{tpu_custom_call.1} parent=1 // pred_check_branch
      %1087 = sbr.rel (%p1085) target = $region33
    $region32: #{tpu_custom_call.1} parent=1 // pred_region
      %v1088 = vld [vmem:[#allocation2] sm:$0xff]
      %v1089 = vld [vmem:[#allocation2 + $0x8] sm:$0xff]
      %v1090 = vld [vmem:[#allocation2 + $0x10] sm:$0xff]
      %v1091 = vld [vmem:[#allocation2 + $0x18] sm:$0xff]
      %v1092 = vld [vmem:[#allocation2 + $0x20] sm:$0xff]
      %v1093 = vld [vmem:[#allocation2 + $0x28] sm:$0xff]
      %v1094 = vld [vmem:[#allocation2 + $0x30] sm:$0xff]
      %v1095 = vld [vmem:[#allocation2 + $0x38] sm:$0xff]
      %v1096 = vld [vmem:[#allocation2 + $0x40] sm:$0xff]
      %v1097 = vld [vmem:[#allocation2 + $0x48] sm:$0xff]
      %v1098 = vld [vmem:[#allocation2 + $0x50] sm:$0xff]
      %v1099 = vld [vmem:[#allocation2 + $0x58] sm:$0xff]
      %v1100 = vld [vmem:[#allocation2 + $0x60] sm:$0xff]
      %v1101 = vld [vmem:[#allocation2 + $0x68] sm:$0xff]
      %v1102 = vld [vmem:[#allocation2 + $0x70] sm:$0xff]
      %v1103 = vld [vmem:[#allocation2 + $0x78] sm:$0xff]
      %v1104 = vld [vmem:[#allocation2 + $0x80] sm:$0xff]
      %v1105 = vld [vmem:[#allocation2 + $0x88] sm:$0xff]
      %v1106 = vld [vmem:[#allocation2 + $0x90] sm:$0xff]
      %v1107 = vld [vmem:[#allocation2 + $0x98] sm:$0xff]
      %v1108 = vld [vmem:[#allocation2 + $0xa0] sm:$0xff]
      %v1109 = vld [vmem:[#allocation2 + $0xa8] sm:$0xff]
      %v1110 = vld [vmem:[#allocation2 + $0xb0] sm:$0xff]
      %v1111 = vld [vmem:[#allocation2 + $0xb8] sm:$0xff]
      %v1112 = vld [vmem:[#allocation2 + $0xc0] sm:$0xff]
      %v1113 = vld [vmem:[#allocation2 + $0xc8] sm:$0xff]
      %v1114 = vld [vmem:[#allocation2 + $0xd0] sm:$0xff]
      %v1115 = vld [vmem:[#allocation2 + $0xd8] sm:$0xff]
      %v1116 = vld [vmem:[#allocation2 + $0xe0] sm:$0xff]
      %v1117 = vld [vmem:[#allocation2 + $0xe8] sm:$0xff]
      %v1118 = vld [vmem:[#allocation2 + $0xf0] sm:$0xff]
      %v1119 = vld [vmem:[#allocation2 + $0xf8] sm:$0xff]
      %v1120 = vld [vmem:[#allocation2 + $0x100] sm:$0xff]
      %v1121 = vld [vmem:[#allocation2 + $0x108] sm:$0xff]
      %v1122 = vld [vmem:[#allocation2 + $0x110] sm:$0xff]
      %v1123 = vld [vmem:[#allocation2 + $0x118] sm:$0xff]
      %v1124 = vld [vmem:[#allocation2 + $0x120] sm:$0xff]
      %v1125 = vld [vmem:[#allocation2 + $0x128] sm:$0xff]
      %v1126 = vld [vmem:[#allocation2 + $0x130] sm:$0xff]
      %v1127 = vld [vmem:[#allocation2 + $0x138] sm:$0xff]
      %v1128 = vld [vmem:[#allocation2 + $0x140] sm:$0xff]
      %v1129 = vld [vmem:[#allocation2 + $0x148] sm:$0xff]
      %v1130 = vld [vmem:[#allocation2 + $0x150] sm:$0xff]
      %v1131 = vld [vmem:[#allocation2 + $0x158] sm:$0xff]
      %v1132 = vld [vmem:[#allocation2 + $0x160] sm:$0xff]
      %v1133 = vld [vmem:[#allocation2 + $0x168] sm:$0xff]
      %v1134 = vld [vmem:[#allocation2 + $0x170] sm:$0xff]
      %v1135 = vld [vmem:[#allocation2 + $0x178] sm:$0xff]
      %v1136 = vld [vmem:[#allocation2 + $0x180] sm:$0xff]
      %v1137 = vld [vmem:[#allocation2 + $0x188] sm:$0xff]
      %v1138 = vld [vmem:[#allocation2 + $0x190] sm:$0xff]
      %v1139 = vld [vmem:[#allocation2 + $0x198] sm:$0xff]
      %v1140 = vld [vmem:[#allocation2 + $0x1a0] sm:$0xff]
      %v1141 = vld [vmem:[#allocation2 + $0x1a8] sm:$0xff]
      %v1142 = vld [vmem:[#allocation2 + $0x1b0] sm:$0xff]
      %v1143 = vld [vmem:[#allocation2 + $0x1b8] sm:$0xff]
      %v1144 = vld [vmem:[#allocation2 + $0x1c0] sm:$0xff]
      %v1145 = vld [vmem:[#allocation2 + $0x1c8] sm:$0xff]
      %v1146 = vld [vmem:[#allocation2 + $0x1d0] sm:$0xff]
      %v1147 = vld [vmem:[#allocation2 + $0x1d8] sm:$0xff]
      %v1148 = vld [vmem:[#allocation2 + $0x1e0] sm:$0xff]
      %v1149 = vld [vmem:[#allocation2 + $0x1e8] sm:$0xff]
      %v1150 = vld [vmem:[#allocation2 + $0x1f0] sm:$0xff]
      %v1151 = vld [vmem:[#allocation2 + $0x1f8] sm:$0xff]
      %v1152 = vld [vmem:[#allocation2 + $0x200] sm:$0xff]
      %v1153 = vld [vmem:[#allocation2 + $0x208] sm:$0xff]
      %v1154 = vld [vmem:[#allocation2 + $0x210] sm:$0xff]
      %v1155 = vld [vmem:[#allocation2 + $0x218] sm:$0xff]
      %v1156 = vld [vmem:[#allocation2 + $0x220] sm:$0xff]
      %v1157 = vld [vmem:[#allocation2 + $0x228] sm:$0xff]
      %v1158 = vld [vmem:[#allocation2 + $0x230] sm:$0xff]
      %v1159 = vld [vmem:[#allocation2 + $0x238] sm:$0xff]
      %v1160 = vld [vmem:[#allocation2 + $0x240] sm:$0xff]
      %v1161 = vld [vmem:[#allocation2 + $0x248] sm:$0xff]
      %v1162 = vld [vmem:[#allocation2 + $0x250] sm:$0xff]
      %v1163 = vld [vmem:[#allocation2 + $0x258] sm:$0xff]
      %v1164 = vld [vmem:[#allocation2 + $0x260] sm:$0xff]
      %v1165 = vld [vmem:[#allocation2 + $0x268] sm:$0xff]
      %v1166 = vld [vmem:[#allocation2 + $0x270] sm:$0xff]
      %v1167 = vld [vmem:[#allocation2 + $0x278] sm:$0xff]
      %v1168 = vld [vmem:[#allocation2 + $0x280] sm:$0xff]
      %v1169 = vld [vmem:[#allocation2 + $0x288] sm:$0xff]
      %v1170 = vld [vmem:[#allocation2 + $0x290] sm:$0xff]
      %v1171 = vld [vmem:[#allocation2 + $0x298] sm:$0xff]
      %v1172 = vld [vmem:[#allocation2 + $0x2a0] sm:$0xff]
      %v1173 = vld [vmem:[#allocation2 + $0x2a8] sm:$0xff]
      %v1174 = vld [vmem:[#allocation2 + $0x2b0] sm:$0xff]
      %v1175 = vld [vmem:[#allocation2 + $0x2b8] sm:$0xff]
      %v1176 = vld [vmem:[#allocation2 + $0x2c0] sm:$0xff]
      %v1177 = vld [vmem:[#allocation2 + $0x2c8] sm:$0xff]
      %v1178 = vld [vmem:[#allocation2 + $0x2d0] sm:$0xff]
      %v1179 = vld [vmem:[#allocation2 + $0x2d8] sm:$0xff]
      %v1180 = vld [vmem:[#allocation2 + $0x2e0] sm:$0xff]
      %v1181 = vld [vmem:[#allocation2 + $0x2e8] sm:$0xff]
      %v1182 = vld [vmem:[#allocation2 + $0x2f0] sm:$0xff]
      %v1183 = vld [vmem:[#allocation2 + $0x2f8] sm:$0xff]
      %v1184 = vld [vmem:[#allocation8] sm:$0x7]
      %v1186 = vlaneseq
      %v1187 = vshrl.u32 %v1186, 7
      %v1188 = vsub.s32 0, %v1187
      %v1189 = vrot.slane %v1184, %v1188
      %v1190 = vlaneseq
      %v1191 = vshrl.u32 %v1190, 7
      %v1192 = vsub.s32 1, %v1191
      %v1193 = vrot.slane %v1184, %v1192
      %v1194 = vlaneseq
      %v1195 = vshrl.u32 %v1194, 7
      %v1196 = vsub.s32 2, %v1195
      %v1197 = vrot.slane %v1184, %v1196
      %v1201 = vadd.f32 %v1088, %v1189
      %v1202 = vadd.f32 %v1089, %v1193
      %v1203 = vadd.f32 %v1090, %v1197
      %v1204 = vadd.f32 %v1091, %v1189
      %v1205 = vadd.f32 %v1092, %v1193
      %v1206 = vadd.f32 %v1093, %v1197
      %v1207 = vadd.f32 %v1094, %v1189
      %v1208 = vadd.f32 %v1095, %v1193
      %v1209 = vadd.f32 %v1096, %v1197
      %v1210 = vadd.f32 %v1097, %v1189
      %v1211 = vadd.f32 %v1098, %v1193
      %v1212 = vadd.f32 %v1099, %v1197
      %v1213 = vadd.f32 %v1100, %v1189
      %v1214 = vadd.f32 %v1101, %v1193
      %v1215 = vadd.f32 %v1102, %v1197
      %v1216 = vadd.f32 %v1103, %v1189
      %v1217 = vadd.f32 %v1104, %v1193
      %v1218 = vadd.f32 %v1105, %v1197
      %v1219 = vadd.f32 %v1106, %v1189
      %v1220 = vadd.f32 %v1107, %v1193
      %v1221 = vadd.f32 %v1108, %v1197
      %v1222 = vadd.f32 %v1109, %v1189
      %v1223 = vadd.f32 %v1110, %v1193
      %v1224 = vadd.f32 %v1111, %v1197
      %v1225 = vadd.f32 %v1112, %v1189
      %v1226 = vadd.f32 %v1113, %v1193
      %v1227 = vadd.f32 %v1114, %v1197
      %v1228 = vadd.f32 %v1115, %v1189
      %v1229 = vadd.f32 %v1116, %v1193
      %v1230 = vadd.f32 %v1117, %v1197
      %v1231 = vadd.f32 %v1118, %v1189
      %v1232 = vadd.f32 %v1119, %v1193
      %v1233 = vadd.f32 %v1120, %v1197
      %v1234 = vadd.f32 %v1121, %v1189
      %v1235 = vadd.f32 %v1122, %v1193
      %v1236 = vadd.f32 %v1123, %v1197
      %v1237 = vadd.f32 %v1124, %v1189
      %v1238 = vadd.f32 %v1125, %v1193
      %v1239 = vadd.f32 %v1126, %v1197
      %v1240 = vadd.f32 %v1127, %v1189
      %v1241 = vadd.f32 %v1128, %v1193
      %v1242 = vadd.f32 %v1129, %v1197
      %v1243 = vadd.f32 %v1130, %v1189
      %v1244 = vadd.f32 %v1131, %v1193
      %v1245 = vadd.f32 %v1132, %v1197
      %v1246 = vadd.f32 %v1133, %v1189
      %v1247 = vadd.f32 %v1134, %v1193
      %v1248 = vadd.f32 %v1135, %v1197
      %v1249 = vadd.f32 %v1136, %v1189
      %v1250 = vadd.f32 %v1137, %v1193
      %v1251 = vadd.f32 %v1138, %v1197
      %v1252 = vadd.f32 %v1139, %v1189
      %v1253 = vadd.f32 %v1140, %v1193
      %v1254 = vadd.f32 %v1141, %v1197
      %v1255 = vadd.f32 %v1142, %v1189
      %v1256 = vadd.f32 %v1143, %v1193
      %v1257 = vadd.f32 %v1144, %v1197
      %v1258 = vadd.f32 %v1145, %v1189
      %v1259 = vadd.f32 %v1146, %v1193
      %v1260 = vadd.f32 %v1147, %v1197
      %v1261 = vadd.f32 %v1148, %v1189
      %v1262 = vadd.f32 %v1149, %v1193
      %v1263 = vadd.f32 %v1150, %v1197
      %v1264 = vadd.f32 %v1151, %v1189
      %v1265 = vadd.f32 %v1152, %v1193
      %v1266 = vadd.f32 %v1153, %v1197
      %v1267 = vadd.f32 %v1154, %v1189
      %v1268 = vadd.f32 %v1155, %v1193
      %v1269 = vadd.f32 %v1156, %v1197
      %v1270 = vadd.f32 %v1157, %v1189
      %v1271 = vadd.f32 %v1158, %v1193
      %v1272 = vadd.f32 %v1159, %v1197
      %v1273 = vadd.f32 %v1160, %v1189
      %v1274 = vadd.f32 %v1161, %v1193
      %v1275 = vadd.f32 %v1162, %v1197
      %v1276 = vadd.f32 %v1163, %v1189
      %v1277 = vadd.f32 %v1164, %v1193
      %v1278 = vadd.f32 %v1165, %v1197
      %v1279 = vadd.f32 %v1166, %v1189
      %v1280 = vadd.f32 %v1167, %v1193
      %v1281 = vadd.f32 %v1168, %v1197
      %v1282 = vadd.f32 %v1169, %v1189
      %v1283 = vadd.f32 %v1170, %v1193
      %v1284 = vadd.f32 %v1171, %v1197
      %v1285 = vadd.f32 %v1172, %v1189
      %v1286 = vadd.f32 %v1173, %v1193
      %v1287 = vadd.f32 %v1174, %v1197
      %v1288 = vadd.f32 %v1175, %v1189
      %v1289 = vadd.f32 %v1176, %v1193
      %v1290 = vadd.f32 %v1177, %v1197
      %v1291 = vadd.f32 %v1178, %v1189
      %v1292 = vadd.f32 %v1179, %v1193
      %v1293 = vadd.f32 %v1180, %v1197
      %v1294 = vadd.f32 %v1181, %v1189
      %v1295 = vadd.f32 %v1182, %v1193
      %v1296 = vadd.f32 %v1183, %v1197
      %v1297 = vpack.c.bf16 %v1204, %v1201
      %v1298 = vpack.c.bf16 %v1205, %v1202
      %v1299 = vpack.c.bf16 %v1206, %v1203
      %v1300 = vpack.c.bf16 %v1210, %v1207
      %v1301 = vpack.c.bf16 %v1211, %v1208
      %v1302 = vpack.c.bf16 %v1212, %v1209
      %v1303 = vpack.c.bf16 %v1216, %v1213
      %v1304 = vpack.c.bf16 %v1217, %v1214
      %v1305 = vpack.c.bf16 %v1218, %v1215
      %v1306 = vpack.c.bf16 %v1222, %v1219
      %v1307 = vpack.c.bf16 %v1223, %v1220
      %v1308 = vpack.c.bf16 %v1224, %v1221
      %v1309 = vpack.c.bf16 %v1228, %v1225
      %v1310 = vpack.c.bf16 %v1229, %v1226
      %v1311 = vpack.c.bf16 %v1230, %v1227
      %v1312 = vpack.c.bf16 %v1234, %v1231
      %v1313 = vpack.c.bf16 %v1235, %v1232
      %v1314 = vpack.c.bf16 %v1236, %v1233
      %v1315 = vpack.c.bf16 %v1240, %v1237
      %v1316 = vpack.c.bf16 %v1241, %v1238
      %v1317 = vpack.c.bf16 %v1242, %v1239
      %v1318 = vpack.c.bf16 %v1246, %v1243
      %v1319 = vpack.c.bf16 %v1247, %v1244
      %v1320 = vpack.c.bf16 %v1248, %v1245
      %v1321 = vpack.c.bf16 %v1252, %v1249
      %v1322 = vpack.c.bf16 %v1253, %v1250
      %v1323 = vpack.c.bf16 %v1254, %v1251
      %v1324 = vpack.c.bf16 %v1258, %v1255
      %v1325 = vpack.c.bf16 %v1259, %v1256
      %v1326 = vpack.c.bf16 %v1260, %v1257
      %v1327 = vpack.c.bf16 %v1264, %v1261
      %v1328 = vpack.c.bf16 %v1265, %v1262
      %v1329 = vpack.c.bf16 %v1266, %v1263
      %v1330 = vpack.c.bf16 %v1270, %v1267
      %v1331 = vpack.c.bf16 %v1271, %v1268
      %v1332 = vpack.c.bf16 %v1272, %v1269
      %v1333 = vpack.c.bf16 %v1276, %v1273
      %v1334 = vpack.c.bf16 %v1277, %v1274
      %v1335 = vpack.c.bf16 %v1278, %v1275
      %v1336 = vpack.c.bf16 %v1282, %v1279
      %v1337 = vpack.c.bf16 %v1283, %v1280
      %v1338 = vpack.c.bf16 %v1284, %v1281
      %v1339 = vpack.c.bf16 %v1288, %v1285
      %v1340 = vpack.c.bf16 %v1289, %v1286
      %v1341 = vpack.c.bf16 %v1290, %v1287
      %v1342 = vpack.c.bf16 %v1294, %v1291
      %v1343 = vpack.c.bf16 %v1295, %v1292
      %v1344 = vpack.c.bf16 %v1296, %v1293
      %v1393 = vunpack.c.l.b16 %v1297
      %v1394 = vunpack.c.l.b16 %v1298
      %v1395 = vunpack.c.l.b16 %v1299
      %v1396 = vunpack.c.h.b16 %v1297
      %v1397 = vunpack.c.h.b16 %v1298
      %v1398 = vunpack.c.h.b16 %v1299
      %v1399 = vunpack.c.l.b16 %v1300
      %v1400 = vunpack.c.l.b16 %v1301
      %v1401 = vunpack.c.l.b16 %v1302
      %v1402 = vunpack.c.h.b16 %v1300
      %v1403 = vunpack.c.h.b16 %v1301
      %v1404 = vunpack.c.h.b16 %v1302
      %v1405 = vunpack.c.l.b16 %v1303
      %v1406 = vunpack.c.l.b16 %v1304
      %v1407 = vunpack.c.l.b16 %v1305
      %v1408 = vunpack.c.h.b16 %v1303
      %v1409 = vunpack.c.h.b16 %v1304
      %v1410 = vunpack.c.h.b16 %v1305
      %v1411 = vunpack.c.l.b16 %v1306
      %v1412 = vunpack.c.l.b16 %v1307
      %v1413 = vunpack.c.l.b16 %v1308
      %v1414 = vunpack.c.h.b16 %v1306
      %v1415 = vunpack.c.h.b16 %v1307
      %v1416 = vunpack.c.h.b16 %v1308
      %v1417 = vunpack.c.l.b16 %v1309
      %v1418 = vunpack.c.l.b16 %v1310
      %v1419 = vunpack.c.l.b16 %v1311
      %v1420 = vunpack.c.h.b16 %v1309
      %v1421 = vunpack.c.h.b16 %v1310
      %v1422 = vunpack.c.h.b16 %v1311
      %v1423 = vunpack.c.l.b16 %v1312
      %v1424 = vunpack.c.l.b16 %v1313
      %v1425 = vunpack.c.l.b16 %v1314
      %v1426 = vunpack.c.h.b16 %v1312
      %v1427 = vunpack.c.h.b16 %v1313
      %v1428 = vunpack.c.h.b16 %v1314
      %v1429 = vunpack.c.l.b16 %v1315
      %v1430 = vunpack.c.l.b16 %v1316
      %v1431 = vunpack.c.l.b16 %v1317
      %v1432 = vunpack.c.h.b16 %v1315
      %v1433 = vunpack.c.h.b16 %v1316
      %v1434 = vunpack.c.h.b16 %v1317
      %v1435 = vunpack.c.l.b16 %v1318
      %v1436 = vunpack.c.l.b16 %v1319
      %v1437 = vunpack.c.l.b16 %v1320
      %v1438 = vunpack.c.h.b16 %v1318
      %v1439 = vunpack.c.h.b16 %v1319
      %v1440 = vunpack.c.h.b16 %v1320
      %v1441 = vunpack.c.l.b16 %v1321
      %v1442 = vunpack.c.l.b16 %v1322
      %v1443 = vunpack.c.l.b16 %v1323
      %v1444 = vunpack.c.h.b16 %v1321
      %v1445 = vunpack.c.h.b16 %v1322
      %v1446 = vunpack.c.h.b16 %v1323
      %v1447 = vunpack.c.l.b16 %v1324
      %v1448 = vunpack.c.l.b16 %v1325
      %v1449 = vunpack.c.l.b16 %v1326
      %v1450 = vunpack.c.h.b16 %v1324
      %v1451 = vunpack.c.h.b16 %v1325
      %v1452 = vunpack.c.h.b16 %v1326
      %v1453 = vunpack.c.l.b16 %v1327
      %v1454 = vunpack.c.l.b16 %v1328
      %v1455 = vunpack.c.l.b16 %v1329
      %v1456 = vunpack.c.h.b16 %v1327
      %v1457 = vunpack.c.h.b16 %v1328
      %v1458 = vunpack.c.h.b16 %v1329
      %v1459 = vunpack.c.l.b16 %v1330
      %v1460 = vunpack.c.l.b16 %v1331
      %v1461 = vunpack.c.l.b16 %v1332
      %v1462 = vunpack.c.h.b16 %v1330
      %v1463 = vunpack.c.h.b16 %v1331
      %v1464 = vunpack.c.h.b16 %v1332
      %v1465 = vunpack.c.l.b16 %v1333
      %v1466 = vunpack.c.l.b16 %v1334
      %v1467 = vunpack.c.l.b16 %v1335
      %v1468 = vunpack.c.h.b16 %v1333
      %v1469 = vunpack.c.h.b16 %v1334
      %v1470 = vunpack.c.h.b16 %v1335
      %v1471 = vunpack.c.l.b16 %v1336
      %v1472 = vunpack.c.l.b16 %v1337
      %v1473 = vunpack.c.l.b16 %v1338
      %v1474 = vunpack.c.h.b16 %v1336
      %v1475 = vunpack.c.h.b16 %v1337
      %v1476 = vunpack.c.h.b16 %v1338
      %v1477 = vunpack.c.l.b16 %v1339
      %v1478 = vunpack.c.l.b16 %v1340
      %v1479 = vunpack.c.l.b16 %v1341
      %v1480 = vunpack.c.h.b16 %v1339
      %v1481 = vunpack.c.h.b16 %v1340
      %v1482 = vunpack.c.h.b16 %v1341
      %v1483 = vunpack.c.l.b16 %v1342
      %v1484 = vunpack.c.l.b16 %v1343
      %v1485 = vunpack.c.l.b16 %v1344
      %v1486 = vunpack.c.h.b16 %v1342
      %v1487 = vunpack.c.h.b16 %v1343
      %v1488 = vunpack.c.h.b16 %v1344
      %v1489 = vpack.c.b16 %v1394, %v1393
      %v1490 = vpack.c.b16 %v1395, %v1395
      %v1491 = vpack.c.b16 %v1397, %v1396
      %v1492 = vpack.c.b16 %v1398, %v1398
      %v1493 = vpack.c.b16 %v1400, %v1399
      %v1494 = vpack.c.b16 %v1401, %v1401
      %v1495 = vpack.c.b16 %v1403, %v1402
      %v1496 = vpack.c.b16 %v1404, %v1404
      %v1497 = vpack.c.b16 %v1406, %v1405
      %v1498 = vpack.c.b16 %v1407, %v1407
      %v1499 = vpack.c.b16 %v1409, %v1408
      %v1500 = vpack.c.b16 %v1410, %v1410
      %v1501 = vpack.c.b16 %v1412, %v1411
      %v1502 = vpack.c.b16 %v1413, %v1413
      %v1503 = vpack.c.b16 %v1415, %v1414
      %v1504 = vpack.c.b16 %v1416, %v1416
      %v1505 = vpack.c.b16 %v1418, %v1417
      %v1506 = vpack.c.b16 %v1419, %v1419
      %v1507 = vpack.c.b16 %v1421, %v1420
      %v1508 = vpack.c.b16 %v1422, %v1422
      %v1509 = vpack.c.b16 %v1424, %v1423
      %v1510 = vpack.c.b16 %v1425, %v1425
      %v1511 = vpack.c.b16 %v1427, %v1426
      %v1512 = vpack.c.b16 %v1428, %v1428
      %v1513 = vpack.c.b16 %v1430, %v1429
      %v1514 = vpack.c.b16 %v1431, %v1431
      %v1515 = vpack.c.b16 %v1433, %v1432
      %v1516 = vpack.c.b16 %v1434, %v1434
      %v1517 = vpack.c.b16 %v1436, %v1435
      %v1518 = vpack.c.b16 %v1437, %v1437
      %v1519 = vpack.c.b16 %v1439, %v1438
      %v1520 = vpack.c.b16 %v1440, %v1440
      %v1521 = vpack.c.b16 %v1442, %v1441
      %v1522 = vpack.c.b16 %v1443, %v1443
      %v1523 = vpack.c.b16 %v1445, %v1444
      %v1524 = vpack.c.b16 %v1446, %v1446
      %v1525 = vpack.c.b16 %v1448, %v1447
      %v1526 = vpack.c.b16 %v1449, %v1449
      %v1527 = vpack.c.b16 %v1451, %v1450
      %v1528 = vpack.c.b16 %v1452, %v1452
      %v1529 = vpack.c.b16 %v1454, %v1453
      %v1530 = vpack.c.b16 %v1455, %v1455
      %v1531 = vpack.c.b16 %v1457, %v1456
      %v1532 = vpack.c.b16 %v1458, %v1458
      %v1533 = vpack.c.b16 %v1460, %v1459
      %v1534 = vpack.c.b16 %v1461, %v1461
      %v1535 = vpack.c.b16 %v1463, %v1462
      %v1536 = vpack.c.b16 %v1464, %v1464
      %v1537 = vpack.c.b16 %v1466, %v1465
      %v1538 = vpack.c.b16 %v1467, %v1467
      %v1539 = vpack.c.b16 %v1469, %v1468
      %v1540 = vpack.c.b16 %v1470, %v1470
      %v1541 = vpack.c.b16 %v1472, %v1471
      %v1542 = vpack.c.b16 %v1473, %v1473
      %v1543 = vpack.c.b16 %v1475, %v1474
      %v1544 = vpack.c.b16 %v1476, %v1476
      %v1545 = vpack.c.b16 %v1478, %v1477
      %v1546 = vpack.c.b16 %v1479, %v1479
      %v1547 = vpack.c.b16 %v1481, %v1480
      %v1548 = vpack.c.b16 %v1482, %v1482
      %v1549 = vpack.c.b16 %v1484, %v1483
      %v1550 = vpack.c.b16 %v1485, %v1485
      %v1551 = vpack.c.b16 %v1487, %v1486
      %v1552 = vpack.c.b16 %v1488, %v1488
      %1617 = vst [vmem:[#allocation9] sm:$0xff] %v1489
      %1618 = vst [vmem:[#allocation9 + $0x8] sm:$0xf] %v1490
      %1619 = vst [vmem:[#allocation9 + $0xc] sm:$0xff] %v1491
      %1620 = vst [vmem:[#allocation9 + $0x14] sm:$0xf] %v1492
      %1621 = vst [vmem:[#allocation9 + $0x18] sm:$0xff] %v1493
      %1622 = vst [vmem:[#allocation9 + $0x20] sm:$0xf] %v1494
      %1623 = vst [vmem:[#allocation9 + $0x24] sm:$0xff] %v1495
      %1624 = vst [vmem:[#allocation9 + $0x2c] sm:$0xf] %v1496
      %1625 = vst [vmem:[#allocation9 + $0x30] sm:$0xff] %v1497
      %1626 = vst [vmem:[#allocation9 + $0x38] sm:$0xf] %v1498
      %1627 = vst [vmem:[#allocation9 + $0x3c] sm:$0xff] %v1499
      %1628 = vst [vmem:[#allocation9 + $0x44] sm:$0xf] %v1500
      %1629 = vst [vmem:[#allocation9 + $0x48] sm:$0xff] %v1501
      %1630 = vst [vmem:[#allocation9 + $0x50] sm:$0xf] %v1502
      %1631 = vst [vmem:[#allocation9 + $0x54] sm:$0xff] %v1503
      %1632 = vst [vmem:[#allocation9 + $0x5c] sm:$0xf] %v1504
      %1633 = vst [vmem:[#allocation9 + $0x60] sm:$0xff] %v1505
      %1634 = vst [vmem:[#allocation9 + $0x68] sm:$0xf] %v1506
      %1635 = vst [vmem:[#allocation9 + $0x6c] sm:$0xff] %v1507
      %1636 = vst [vmem:[#allocation9 + $0x74] sm:$0xf] %v1508
      %1637 = vst [vmem:[#allocation9 + $0x78] sm:$0xff] %v1509
      %1638 = vst [vmem:[#allocation9 + $0x80] sm:$0xf] %v1510
      %1639 = vst [vmem:[#allocation9 + $0x84] sm:$0xff] %v1511
      %1640 = vst [vmem:[#allocation9 + $0x8c] sm:$0xf] %v1512
      %1641 = vst [vmem:[#allocation9 + $0x90] sm:$0xff] %v1513
      %1642 = vst [vmem:[#allocation9 + $0x98] sm:$0xf] %v1514
      %1643 = vst [vmem:[#allocation9 + $0x9c] sm:$0xff] %v1515
      %1644 = vst [vmem:[#allocation9 + $0xa4] sm:$0xf] %v1516
      %1645 = vst [vmem:[#allocation9 + $0xa8] sm:$0xff] %v1517
      %1646 = vst [vmem:[#allocation9 + $0xb0] sm:$0xf] %v1518
      %1647 = vst [vmem:[#allocation9 + $0xb4] sm:$0xff] %v1519
      %1648 = vst [vmem:[#allocation9 + $0xbc] sm:$0xf] %v1520
      %1649 = vst [vmem:[#allocation9 + $0xc0] sm:$0xff] %v1521
      %1650 = vst [vmem:[#allocation9 + $0xc8] sm:$0xf] %v1522
      %1651 = vst [vmem:[#allocation9 + $0xcc] sm:$0xff] %v1523
      %1652 = vst [vmem:[#allocation9 + $0xd4] sm:$0xf] %v1524
      %1653 = vst [vmem:[#allocation9 + $0xd8] sm:$0xff] %v1525
      %1654 = vst [vmem:[#allocation9 + $0xe0] sm:$0xf] %v1526
      %1655 = vst [vmem:[#allocation9 + $0xe4] sm:$0xff] %v1527
      %1656 = vst [vmem:[#allocation9 + $0xec] sm:$0xf] %v1528
      %1657 = vst [vmem:[#allocation9 + $0xf0] sm:$0xff] %v1529
      %1658 = vst [vmem:[#allocation9 + $0xf8] sm:$0xf] %v1530
      %1659 = vst [vmem:[#allocation9 + $0xfc] sm:$0xff] %v1531
      %1660 = vst [vmem:[#allocation9 + $0x104] sm:$0xf] %v1532
      %1661 = vst [vmem:[#allocation9 + $0x108] sm:$0xff] %v1533
      %1662 = vst [vmem:[#allocation9 + $0x110] sm:$0xf] %v1534
      %1663 = vst [vmem:[#allocation9 + $0x114] sm:$0xff] %v1535
      %1664 = vst [vmem:[#allocation9 + $0x11c] sm:$0xf] %v1536
      %1665 = vst [vmem:[#allocation9 + $0x120] sm:$0xff] %v1537
      %1666 = vst [vmem:[#allocation9 + $0x128] sm:$0xf] %v1538
      %1667 = vst [vmem:[#allocation9 + $0x12c] sm:$0xff] %v1539
      %1668 = vst [vmem:[#allocation9 + $0x134] sm:$0xf] %v1540
      %1669 = vst [vmem:[#allocation9 + $0x138] sm:$0xff] %v1541
      %1670 = vst [vmem:[#allocation9 + $0x140] sm:$0xf] %v1542
      %1671 = vst [vmem:[#allocation9 + $0x144] sm:$0xff] %v1543
      %1672 = vst [vmem:[#allocation9 + $0x14c] sm:$0xf] %v1544
      %1673 = vst [vmem:[#allocation9 + $0x150] sm:$0xff] %v1545
      %1674 = vst [vmem:[#allocation9 + $0x158] sm:$0xf] %v1546
      %1675 = vst [vmem:[#allocation9 + $0x15c] sm:$0xff] %v1547
      %1676 = vst [vmem:[#allocation9 + $0x164] sm:$0xf] %v1548
      %1677 = vst [vmem:[#allocation9 + $0x168] sm:$0xff] %v1549
      %1678 = vst [vmem:[#allocation9 + $0x170] sm:$0xf] %v1550
      %1679 = vst [vmem:[#allocation9 + $0x174] sm:$0xff] %v1551
      %1680 = vst [vmem:[#allocation9 + $0x17c] sm:$0xf] %v1552
    $region33: #{tpu_custom_call.1} parent=1 // pred_fallthru
      _
    // Predicated region
    $region34: #{tpu_custom_call.1} parent=1 // pred_check
      _
    $region35: #{tpu_custom_call.1} parent=1 // pred_check_branch
      %1682 = sbr.rel (0) target = $region37
    $region36: #{tpu_custom_call.1} parent=1 // pred_region
      %s1684 = ssub.s32 6144, 6144
      %1685 = vsyncadd [#allocation5], %s1684
      %s1686 = sshll.u32 [#allocation9], 4
      %s1687 = int_to_ptr.vmem [resolvable:$true] %s1686
      %1692 = dma.vmem_to_hbm [thread:$0]  %s1687, 6144, %s3, [#allocation5], 192, 192, 12
    $region37: #{tpu_custom_call.1} parent=1 // pred_fallthru
      _
    // Predicated region
    $region38: #{tpu_custom_call.1} parent=1 // pred_check
      _
    $region39: #{tpu_custom_call.1} parent=1 // pred_check_branch
      %1694 = sbr.rel (0) target = $region41
    $region40: #{tpu_custom_call.1} parent=1 // pred_region
      %1695 = dma.done [#allocation5], 6144
    $region41: #{tpu_custom_call.1} parent=1 // pred_fallthru
      _
    %1696 = vsyncpa [#allocation4], 1
    %1697 = vsyncpa [#allocation7], 1
    %1698 = vsyncpa [#allocation5], 1

</llo_original>
